<compile_context>
chip_gen: v5e
topology: v5e:2x2
jax: 0.10.0
libtpu: 0.0.40
codegen_flags: <defaults>
</compile_context>

<pallas_src>
import warnings

import jax
import jax.numpy as jnp
from jax.experimental import pallas as pl
from jax.experimental.pallas import tpu as pltpu

_LANE = 128
_SUBLANE = 8
_MAX_BLOCK_BYTES = 2 * 1024 * 1024  # per pipeline buffer; 3 arrays x 2 bufs <= 12 MiB


def _add_kernel(a_ref, b_ref, o_ref):
    # Pure elementwise add on the current VMEM tile (VPU path).
    o_ref[...] = a_ref[...] + b_ref[...]


def _choose_layout(total: int, itemsize: int):
    """Pick (rows, cols, row_tile) for a flattened elementwise kernel.

    Preference order:
      * cols (lane axis) as close to a multiple of 128 as possible
        -> dense vregs, unmasked stores, contiguous DMA rows,
      * a small grid (low fixed per-step cost), >= 2 for pipelining, even so
        v7x's two TensorCores get equal shares,
      * per-buffer blocks small enough that 3 arrays x 2 pipeline buffers stay
        well below v5e's 16 MiB default scoped-VMEM limit.
    Falls back to a single (1, total) full-extent block (always legal).
    """
    best = (1, total, 1)
    best_score = float("-inf")

    divisors = sorted(
        {d for i in range(1, int(total ** 0.5) + 1) if total % i == 0
         for d in (i, total // i)}
    )

    for cols in divisors:
        if cols < _LANE or cols > 65536:
            continue
        rows = total // cols
        lane_density = cols / (-(-cols // _LANE) * _LANE)
        tiles = [t for t in range(_SUBLANE, rows + 1, _SUBLANE) if rows % t == 0]
        if rows not in tiles:
            tiles.append(rows)            # full-extent row block is always legal
        for row_tile in tiles:
            if row_tile * cols * itemsize > _MAX_BLOCK_BYTES:
                continue
            grid = rows // row_tile
            score = 100.0 * lane_density
            score -= 0.35 * grid          # ~0.35 us fixed overhead per grid step
            if grid == 1:
                score -= 50.0             # no pipelining / no megacore split
            elif grid % 2 == 0:
                score += 3.0              # even split across v7x's 2 TensorCores
            if score > best_score:
                best_score = score
                best = (rows, cols, row_tile)
    return best


def pallas_add(a: jax.Array, b: jax.Array) -> jax.Array:
    """Elementwise add reproducing torch `operator.add(x233, x247)`."""
    assert a.shape == b.shape and a.dtype == b.dtype
    orig_shape = a.shape
    total = int(a.size)
    itemsize = jnp.dtype(a.dtype).itemsize
    rows, cols, row_tile = _choose_layout(total, itemsize)

    # Elementwise op: any same-order reshape is legal; pick the lane-dense one.
    a2 = a.reshape(rows, cols)
    b2 = b.reshape(rows, cols)
    grid = (rows // row_tile,)

    out2 = pl.pallas_call(
        _add_kernel,
        out_shape=jax.ShapeDtypeStruct((rows, cols), a.dtype),
        grid=grid,
        in_specs=[
            pl.BlockSpec((row_tile, cols), lambda i: (i, 0)),
            pl.BlockSpec((row_tile, cols), lambda i: (i, 0)),
        ],
        out_specs=pl.BlockSpec((row_tile, cols), lambda i: (i, 0)),
        # Write the result in place into the first operand's buffer; together
        # with donation at the jit boundary this drops HBM traffic 3x -> 2x.
        input_output_aliases={0: 0},
        cost_estimate=pl.CostEstimate(
            flops=total,
            transcendentals=0,
            bytes_accessed=3 * total * itemsize,
        ),
        compiler_params=pltpu.CompilerParams(
            dimension_semantics=("parallel",),
        ),
    )(a2, b2)

    return out2.reshape(orig_shape)


# In-place entry point: donating x233 lets XLA reuse its HBM buffer for the
# output (matching the pallas_call's input_output_aliases).
pallas_add_inplace = jax.jit(pallas_add, donate_argnums=(0,))


if __name__ == "__main__":
    # Harmless if donation falls through (XLA just copies); keeps output clean.
    warnings.filterwarnings("ignore", message="Some donated buffers were not usable")

    key = jax.random.PRNGKey(0)
    k1, k2 = jax.random.split(key)

    # Shape implied by the module's forward: [1, 2904, 14, 14] f32 (~2.2 MiB each).
    shape = (1, 2904, 14, 14)
    x233 = jax.random.normal(k1, shape, dtype=jnp.float32)
    x247 = jax.random.normal(k2, shape, dtype=jnp.float32)

    # Compute the reference BEFORE the donating call (x233's buffer is consumed).
    ref = x233 + x247
    ref = jax.block_until_ready(ref)

    out = pallas_add_inplace(x233, x247)
    out = jax.block_until_ready(out)

    assert out.shape == shape
    assert out.dtype == jnp.float32
    assert jnp.allclose(out, ref, atol=1e-6, rtol=1e-6)

    print("KERNEL_OK")
</pallas_src>

<mosaic_0001>
module attributes {stable_mosaic.version = 11 : i64} {
  func.func @_add_kernel(%arg0: i32, %arg1: memref<16x17787xf32, #tpu.memory_space<vmem>>, %arg2: memref<16x17787xf32, #tpu.memory_space<vmem>>, %arg3: memref<16x17787xf32, #tpu.memory_space<vmem>>) attributes {dimension_semantics = [#tpu.dimension_semantics<parallel>], iteration_bounds = array<i64: 2>, scalar_prefetch = 0 : i64, scratch_operands = 0 : i64, tpu.core_type = #tpu.core_type<tc>, window_params = [{transform_indices = @transform_0, window_bounds = array<i64: 16, 17787>}, {transform_indices = @transform_1, window_bounds = array<i64: 16, 17787>}, {transform_indices = @transform_2, window_bounds = array<i64: 16, 17787>}]} {
    %c0 = arith.constant 0 : index
    %c0_0 = arith.constant 0 : index
    %0 = vector.load %arg1[%c0, %c0_0] : memref<16x17787xf32, #tpu.memory_space<vmem>>, vector<16x17787xf32>
    %c0_1 = arith.constant 0 : index
    %c0_2 = arith.constant 0 : index
    %1 = vector.load %arg2[%c0_1, %c0_2] : memref<16x17787xf32, #tpu.memory_space<vmem>>, vector<16x17787xf32>
    %2 = arith.addf %0, %1 : vector<16x17787xf32>
    %c0_3 = arith.constant 0 : index
    %c0_4 = arith.constant 0 : index
    %3 = vector.load %arg3[%c0_3, %c0_4] : memref<16x17787xf32, #tpu.memory_space<vmem>>, vector<16x17787xf32>
    tpu.vector_store %arg3[%c0_3, %c0_4], %2 {strides = array<i32>} : memref<16x17787xf32, #tpu.memory_space<vmem>>, vector<16x17787xf32>,
    return
  }
  func.func @transform_0(%arg0: i32) -> (i32, i32) {
    %c0_i32 = arith.constant 0 : i32
    %c0_i32_0 = arith.constant 0 : i32
    return %arg0, %c0_i32 : i32, i32
  }
  func.func @transform_1(%arg0: i32) -> (i32, i32) {
    %c0_i32 = arith.constant 0 : i32
    %c0_i32_0 = arith.constant 0 : i32
    return %arg0, %c0_i32 : i32, i32
  }
  func.func @transform_2(%arg0: i32) -> (i32, i32) {
    %c0_i32 = arith.constant 0 : i32
    %c0_i32_0 = arith.constant 0 : i32
    return %arg0, %c0_i32 : i32, i32
  }
}

</mosaic_0001>

<llo_original>
// kernel: pallas_add.1
$region0: #{pallas_add.1}
  #allocation0 [shape = 'u32[]', space=smem, size = 0x4, offset = 0x4, fixed_abs, tag = 'smem constant byte address 0x4 - core index']
  #allocation1 [shape = 'u32[72,128]{1,0:T(1,128)}', space=vmem, size = 0x9000, scoped, tag = 'internal scratch']
  %s0 = inlined_call_operand.vmem [shape: f32[32,17787], index: 0, kind: input, shape index: {}, may-alias: {0,2}]
  %s1 = inlined_call_operand.vmem [shape: f32[32,17787], index: 1, kind: input, shape index: {}]
  %s2 = inlined_call_operand.vmem [shape: f32[32,17787], index: 2, kind: output, shape index: {}, may-alias: {0,2}]
  %s3 = sld [smem:[#allocation0]]
  $region41: #{pallas_add.1} parent=0
    _
  %s5 = ssub.s32 1, %s3
  %s6 = scalar_select 0, %s5, %s3
  loop: start=0, step=1, limit=4
  $region2: #{pallas_add.1} parent=0 // loop_pre_header
    _
  $region3: #{pallas_add.1} parent=0 // loop_header
    %s8 = sphi 0, %s12
    %p9 = scmp.ge.s32.totalorder %s8, 4
    %s18 = sphi 0, %s20
    %s21 = sphi 0, %s18
    %s22 = sphi 0, %s21
    %s38 = sphi 0, %s22
    %s44 = sphi 0, %s46
    %s47 = sphi 0, %s44
    %s48 = sphi 0, %s47
    %s64 = sphi 0, %s48
    %s70 = sphi 0, %s72
    %s73 = sphi 0, %s70
    %s74 = sphi 0, %s73
    %s90 = sphi 0, %s74
  $region4: #{pallas_add.1} parent=0 // loop_header_branch
    %11 = sbr.rel (%p9) target = $region8
  $region5: #{pallas_add.1} parent=0 // loop_body
    %s13 = ssub.s32 %s8, 1
    %s14 = ssub.s32 %s8, 2
    %s15 = sadd.s32 %s8, 1
    %s16 = ssub.s32 %s8, %s15
    %p17 = scmp.eq.s32.totalorder %s16, 0
    %s19 = sadd.s32 %s18, 1
    %s20 = scalar_select %p17, %s18, %s19
    %p23 = pneg %p17
    %p24 = scmp.eq.s32.totalorder %s8, 1
    %p25 = por %p23, %p24
    %p26 = scmp.ne.s32.totalorder %s18, %s21
    %p27 = scmp.eq.s32.totalorder %s8, 0
    %p28 = por %p26, %p27
    %p29 = scmp.ne.s32.totalorder %s18, %s21
    %p30 = scmp.eq.s32.totalorder %s13, 1
    %p31 = por %p29, %p30
    %p32 = scmp.ne.s32.totalorder %s21, %s22
    %p33 = scmp.eq.s32.totalorder %s13, 0
    %p34 = por %p32, %p33
    %p35 = scmp.ne.s32.totalorder %s21, %s22
    %p36 = scmp.eq.s32.totalorder %s14, 1
    %p37 = por %p35, %p36
    %p39 = scmp.ne.s32.totalorder %s22, %s38
    %p40 = scmp.eq.s32.totalorder %s14, 0
    %p41 = por %p39, %p40
    %s42 = ssub.s32 %s8, %s15
    %p43 = scmp.eq.s32.totalorder %s42, 0
    %s45 = sadd.s32 %s44, 1
    %s46 = scalar_select %p43, %s44, %s45
    %p49 = pneg %p43
    %p50 = scmp.eq.s32.totalorder %s8, 1
    %p51 = por %p49, %p50
    %p52 = scmp.ne.s32.totalorder %s44, %s47
    %p53 = scmp.eq.s32.totalorder %s8, 0
    %p54 = por %p52, %p53
    %p55 = scmp.ne.s32.totalorder %s44, %s47
    %p56 = scmp.eq.s32.totalorder %s13, 1
    %p57 = por %p55, %p56
    %p58 = scmp.ne.s32.totalorder %s47, %s48
    %p59 = scmp.eq.s32.totalorder %s13, 0
    %p60 = por %p58, %p59
    %p61 = scmp.ne.s32.totalorder %s47, %s48
    %p62 = scmp.eq.s32.totalorder %s14, 1
    %p63 = por %p61, %p62
    %p65 = scmp.ne.s32.totalorder %s48, %s64
    %p66 = scmp.eq.s32.totalorder %s14, 0
    %p67 = por %p65, %p66
    %s68 = ssub.s32 %s8, %s15
    %p69 = scmp.eq.s32.totalorder %s68, 0
    %s71 = sadd.s32 %s70, 1
    %s72 = scalar_select %p69, %s70, %s71
    %p75 = pneg %p69
    %p76 = scmp.eq.s32.totalorder %s8, 1
    %p77 = por %p75, %p76
    %p78 = scmp.ne.s32.totalorder %s70, %s73
    %p79 = scmp.eq.s32.totalorder %s8, 0
    %p80 = por %p78, %p79
    %p81 = scmp.ne.s32.totalorder %s70, %s73
    %p82 = scmp.eq.s32.totalorder %s13, 1
    %p83 = por %p81, %p82
    %p84 = scmp.ne.s32.totalorder %s73, %s74
    %p85 = scmp.eq.s32.totalorder %s13, 0
    %p86 = por %p84, %p85
    %p87 = scmp.ne.s32.totalorder %s73, %s74
    %p88 = scmp.eq.s32.totalorder %s14, 1
    %p89 = por %p87, %p88
    %p91 = scmp.ne.s32.totalorder %s74, %s90
    %p92 = scmp.eq.s32.totalorder %s14, 0
    %p93 = por %p91, %p92
    %p94 = scmp.le.s32.totalorder 1, %s8
    %p95 = scmp.lt.s32.totalorder %s8, 3
    %p96 = pnand %p94, %p95
    %p97 = pneg %p96
    // Predicated region
    $region9: #{pallas_add.1} parent=5 // pred_check
      _
    $region10: #{pallas_add.1} parent=5 // pred_check_branch
      %99 = sbr.rel (%p96) target = $region12
    $region11: #{pallas_add.1} parent=5 // pred_region
      %s100 = ssub.s32 %s8, 1
    $region12: #{pallas_add.1} parent=5 // pred_fallthru
      _
    %p101 = scmp.lt.s32.totalorder %s8, 2
    // Predicated region
    $region13: #{pallas_add.1} parent=5 // pred_check
      %p102 = pneg %p101
    $region14: #{pallas_add.1} parent=5 // pred_check_branch
      %104 = sbr.rel (%p102) target = $region16
    $region15: #{pallas_add.1} parent=5 // pred_region
      // Predicated region
      $region17: #{pallas_add.1} parent=15 // pred_check
        %p105 = pneg %p28
      $region18: #{pallas_add.1} parent=15 // pred_check_branch
        %107 = sbr.rel (%p105) target = $region20
      $region19: #{pallas_add.1} parent=15 // pred_region
        %s108 = smul.u32 2, %s8
        %p109 = scmp.lt.s32.totalorder %s108, 3
        %s110 = scalar_select %p109, %s108, 3
        %s111 = smul.addr %s110, 139
        %s112 = smul.addr %s111, 8
        %s113 = scalar_lea.vmem %s0, %s112
        %s114 = smul.u32 2, %s8
      $region20: #{pallas_add.1} parent=15 // pred_fallthru
        _
      // Predicated region
      $region21: #{pallas_add.1} parent=15 // pred_check
        %p115 = pneg %p54
      $region22: #{pallas_add.1} parent=15 // pred_check_branch
        %117 = sbr.rel (%p115) target = $region24
      $region23: #{pallas_add.1} parent=15 // pred_region
        %s118 = smul.u32 2, %s8
        %p119 = scmp.lt.s32.totalorder %s118, 3
        %s120 = scalar_select %p119, %s118, 3
        %s121 = smul.addr %s120, 139
        %s122 = smul.addr %s121, 8
        %s123 = scalar_lea.vmem %s1, %s122
        %s124 = smul.u32 2, %s8
      $region24: #{pallas_add.1} parent=15 // pred_fallthru
        _
    $region16: #{pallas_add.1} parent=5 // pred_fallthru
      _
    %p125 = scmp.le.s32.totalorder 1, %s8
    %p126 = scmp.lt.s32.totalorder %s8, 3
    %p127 = pnand %p125, %p126
    %p128 = pneg %p127
    // Predicated region
    $region25: #{pallas_add.1} parent=5 // pred_check
      _
    $region26: #{pallas_add.1} parent=5 // pred_check_branch
      %130 = sbr.rel (%p127) target = $region28
    $region27: #{pallas_add.1} parent=5 // pred_region
      %s131 = ssub.s32 %s8, 1
      %s132 = smul.u32 2, %s13
      %p133 = scmp.lt.s32.totalorder %s132, 3
      %s134 = scalar_select %p133, %s132, 3
      %s135 = smul.addr %s134, 139
      %s136 = smul.addr %s135, 8
      %s137 = scalar_lea.vmem %s0, %s136
      %p138 = pneg %p34
      %p139 = pneg %p31
      %s140 = smul.u32 2, %s13
      %p141 = scmp.lt.s32.totalorder %s140, 3
      %s142 = scalar_select %p141, %s140, 3
      %s143 = smul.addr %s142, 139
      %s144 = smul.addr %s143, 8
      %s145 = scalar_lea.vmem %s1, %s144
      %p146 = pneg %p60
      %p147 = pneg %p57
      %p148 = pneg %p86
      %p149 = pneg %p83
      %s150 = smul.u32 2, %s13
      %p151 = scmp.lt.s32.totalorder %s150, 3
      %s152 = scalar_select %p151, %s150, 3
      %s153 = smul.addr %s152, 139
      %s154 = smul.addr %s153, 8
      %s155 = scalar_lea.vmem %s2, %s154
      %s156 = smul.u32 2, %s13
      %p157 = scmp.lt.s32.totalorder %s156, 3
      %s158 = scalar_select %p157, %s156, 3
      %s159 = smul.addr %s158, 139
      %s160 = smul.addr %s159, 8
      %s161 = scalar_lea.vmem %s0, %s160
      %s162 = smul.u32 2, %s13
      %s163 = smul.u32 2, %s13
      %p164 = scmp.lt.s32.totalorder %s163, 3
      %s165 = scalar_select %p164, %s163, 3
      %s166 = smul.addr %s165, 139
      %s167 = smul.addr %s166, 8
      %s168 = scalar_lea.vmem %s1, %s167
      %s169 = smul.u32 2, %s13
      %s170 = smul.u32 2, %s13
      %p171 = scmp.lt.s32.totalorder %s170, 3
      %s172 = scalar_select %p171, %s170, 3
      %s173 = smul.addr %s172, 139
      %s174 = smul.addr %s173, 8
      %s175 = scalar_lea.vmem %s2, %s174
      %s176 = smul.u32 2, %s13
      %v177 = vld [vmem:[%s161] sm:$0xff]
      %v178 = vld [vmem:[%s161 + $0x8] sm:$0xff]
      %v179 = vld [vmem:[%s161 + $0x10] sm:$0xff]
      %v180 = vld [vmem:[%s161 + $0x18] sm:$0xff]
      %v181 = vld [vmem:[%s161 + $0x20] sm:$0xff]
      %v182 = vld [vmem:[%s161 + $0x28] sm:$0xff]
      %v183 = vld [vmem:[%s161 + $0x30] sm:$0xff]
      %v184 = vld [vmem:[%s161 + $0x38] sm:$0xff]
      %v185 = vld [vmem:[%s161 + $0x40] sm:$0xff]
      %v186 = vld [vmem:[%s161 + $0x48] sm:$0xff]
      %v187 = vld [vmem:[%s161 + $0x50] sm:$0xff]
      %v188 = vld [vmem:[%s161 + $0x58] sm:$0xff]
      %v189 = vld [vmem:[%s161 + $0x60] sm:$0xff]
      %v190 = vld [vmem:[%s161 + $0x68] sm:$0xff]
      %v191 = vld [vmem:[%s161 + $0x70] sm:$0xff]
      %v192 = vld [vmem:[%s161 + $0x78] sm:$0xff]
      %v193 = vld [vmem:[%s161 + $0x80] sm:$0xff]
      %v194 = vld [vmem:[%s161 + $0x88] sm:$0xff]
      %v195 = vld [vmem:[%s161 + $0x90] sm:$0xff]
      %v196 = vld [vmem:[%s161 + $0x98] sm:$0xff]
      %v197 = vld [vmem:[%s161 + $0xa0] sm:$0xff]
      %v198 = vld [vmem:[%s161 + $0xa8] sm:$0xff]
      %v199 = vld [vmem:[%s161 + $0xb0] sm:$0xff]
      %v200 = vld [vmem:[%s161 + $0xb8] sm:$0xff]
      %v201 = vld [vmem:[%s161 + $0xc0] sm:$0xff]
      %v202 = vld [vmem:[%s161 + $0xc8] sm:$0xff]
      %v203 = vld [vmem:[%s161 + $0xd0] sm:$0xff]
      %v204 = vld [vmem:[%s161 + $0xd8] sm:$0xff]
      %v205 = vld [vmem:[%s161 + $0xe0] sm:$0xff]
      %v206 = vld [vmem:[%s161 + $0xe8] sm:$0xff]
      %v207 = vld [vmem:[%s161 + $0xf0] sm:$0xff]
      %v208 = vld [vmem:[%s161 + $0xf8] sm:$0xff]
      %v209 = vld [vmem:[%s161 + $0x100] sm:$0xff]
      %v210 = vld [vmem:[%s161 + $0x108] sm:$0xff]
      %v211 = vld [vmem:[%s161 + $0x110] sm:$0xff]
      %v212 = vld [vmem:[%s161 + $0x118] sm:$0xff]
      %v213 = vld [vmem:[%s161 + $0x120] sm:$0xff]
      %v214 = vld [vmem:[%s161 + $0x128] sm:$0xff]
      %v215 = vld [vmem:[%s161 + $0x130] sm:$0xff]
      %v216 = vld [vmem:[%s161 + $0x138] sm:$0xff]
      %v217 = vld [vmem:[%s161 + $0x140] sm:$0xff]
      %v218 = vld [vmem:[%s161 + $0x148] sm:$0xff]
      %v219 = vld [vmem:[%s161 + $0x150] sm:$0xff]
      %v220 = vld [vmem:[%s161 + $0x158] sm:$0xff]
      %v221 = vld [vmem:[%s161 + $0x160] sm:$0xff]
      %v222 = vld [vmem:[%s161 + $0x168] sm:$0xff]
      %v223 = vld [vmem:[%s161 + $0x170] sm:$0xff]
      %v224 = vld [vmem:[%s161 + $0x178] sm:$0xff]
      %v225 = vld [vmem:[%s161 + $0x180] sm:$0xff]
      %v226 = vld [vmem:[%s161 + $0x188] sm:$0xff]
      %v227 = vld [vmem:[%s161 + $0x190] sm:$0xff]
      %v228 = vld [vmem:[%s161 + $0x198] sm:$0xff]
      %v229 = vld [vmem:[%s161 + $0x1a0] sm:$0xff]
      %v230 = vld [vmem:[%s161 + $0x1a8] sm:$0xff]
      %v231 = vld [vmem:[%s161 + $0x1b0] sm:$0xff]
      %v232 = vld [vmem:[%s161 + $0x1b8] sm:$0xff]
      %v233 = vld [vmem:[%s161 + $0x1c0] sm:$0xff]
      %v234 = vld [vmem:[%s161 + $0x1c8] sm:$0xff]
      %v235 = vld [vmem:[%s161 + $0x1d0] sm:$0xff]
      %v236 = vld [vmem:[%s161 + $0x1d8] sm:$0xff]
      %v237 = vld [vmem:[%s161 + $0x1e0] sm:$0xff]
      %v238 = vld [vmem:[%s161 + $0x1e8] sm:$0xff]
      %v239 = vld [vmem:[%s161 + $0x1f0] sm:$0xff]
      %v240 = vld [vmem:[%s161 + $0x1f8] sm:$0xff]
      %v241 = vld [vmem:[%s161 + $0x200] sm:$0xff]
      %v242 = vld [vmem:[%s161 + $0x208] sm:$0xff]
      %v243 = vld [vmem:[%s161 + $0x210] sm:$0xff]
      %v244 = vld [vmem:[%s161 + $0x218] sm:$0xff]
      %v245 = vld [vmem:[%s161 + $0x220] sm:$0xff]
      %v246 = vld [vmem:[%s161 + $0x228] sm:$0xff]
      %v247 = vld [vmem:[%s161 + $0x230] sm:$0xff]
      %v248 = vld [vmem:[%s161 + $0x238] sm:$0xff]
      %v249 = vld [vmem:[%s161 + $0x240] sm:$0xff]
      %v250 = vld [vmem:[%s161 + $0x248] sm:$0xff]
      %v251 = vld [vmem:[%s161 + $0x250] sm:$0xff]
      %v252 = vld [vmem:[%s161 + $0x258] sm:$0xff]
      %v253 = vld [vmem:[%s161 + $0x260] sm:$0xff]
      %v254 = vld [vmem:[%s161 + $0x268] sm:$0xff]
      %v255 = vld [vmem:[%s161 + $0x270] sm:$0xff]
      %v256 = vld [vmem:[%s161 + $0x278] sm:$0xff]
      %v257 = vld [vmem:[%s161 + $0x280] sm:$0xff]
      %v258 = vld [vmem:[%s161 + $0x288] sm:$0xff]
      %v259 = vld [vmem:[%s161 + $0x290] sm:$0xff]
      %v260 = vld [vmem:[%s161 + $0x298] sm:$0xff]
      %v261 = vld [vmem:[%s161 + $0x2a0] sm:$0xff]
      %v262 = vld [vmem:[%s161 + $0x2a8] sm:$0xff]
      %v263 = vld [vmem:[%s161 + $0x2b0] sm:$0xff]
      %v264 = vld [vmem:[%s161 + $0x2b8] sm:$0xff]
      %v265 = vld [vmem:[%s161 + $0x2c0] sm:$0xff]
      %v266 = vld [vmem:[%s161 + $0x2c8] sm:$0xff]
      %v267 = vld [vmem:[%s161 + $0x2d0] sm:$0xff]
      %v268 = vld [vmem:[%s161 + $0x2d8] sm:$0xff]
      %v269 = vld [vmem:[%s161 + $0x2e0] sm:$0xff]
      %v270 = vld [vmem:[%s161 + $0x2e8] sm:$0xff]
      %v271 = vld [vmem:[%s161 + $0x2f0] sm:$0xff]
      %v272 = vld [vmem:[%s161 + $0x2f8] sm:$0xff]
      %v273 = vld [vmem:[%s161 + $0x300] sm:$0xff]
      %v274 = vld [vmem:[%s161 + $0x308] sm:$0xff]
      %v275 = vld [vmem:[%s161 + $0x310] sm:$0xff]
      %v276 = vld [vmem:[%s161 + $0x318] sm:$0xff]
      %v277 = vld [vmem:[%s161 + $0x320] sm:$0xff]
      %v278 = vld [vmem:[%s161 + $0x328] sm:$0xff]
      %v279 = vld [vmem:[%s161 + $0x330] sm:$0xff]
      %v280 = vld [vmem:[%s161 + $0x338] sm:$0xff]
      %v281 = vld [vmem:[%s161 + $0x340] sm:$0xff]
      %v282 = vld [vmem:[%s161 + $0x348] sm:$0xff]
      %v283 = vld [vmem:[%s161 + $0x350] sm:$0xff]
      %v284 = vld [vmem:[%s161 + $0x358] sm:$0xff]
      %v285 = vld [vmem:[%s161 + $0x360] sm:$0xff]
      %v286 = vld [vmem:[%s161 + $0x368] sm:$0xff]
      %v287 = vld [vmem:[%s161 + $0x370] sm:$0xff]
      %v288 = vld [vmem:[%s161 + $0x378] sm:$0xff]
      %v289 = vld [vmem:[%s161 + $0x380] sm:$0xff]
      %v290 = vld [vmem:[%s161 + $0x388] sm:$0xff]
      %v291 = vld [vmem:[%s161 + $0x390] sm:$0xff]
      %v292 = vld [vmem:[%s161 + $0x398] sm:$0xff]
      %v293 = vld [vmem:[%s161 + $0x3a0] sm:$0xff]
      %v294 = vld [vmem:[%s161 + $0x3a8] sm:$0xff]
      %v295 = vld [vmem:[%s161 + $0x3b0] sm:$0xff]
      %v296 = vld [vmem:[%s161 + $0x3b8] sm:$0xff]
      %v297 = vld [vmem:[%s161 + $0x3c0] sm:$0xff]
      %v298 = vld [vmem:[%s161 + $0x3c8] sm:$0xff]
      %v299 = vld [vmem:[%s161 + $0x3d0] sm:$0xff]
      %v300 = vld [vmem:[%s161 + $0x3d8] sm:$0xff]
      %v301 = vld [vmem:[%s161 + $0x3e0] sm:$0xff]
      %v302 = vld [vmem:[%s161 + $0x3e8] sm:$0xff]
      %v303 = vld [vmem:[%s161 + $0x3f0] sm:$0xff]
      %v304 = vld [vmem:[%s161 + $0x3f8] sm:$0xff]
      %v305 = vld [vmem:[%s161 + $0x400] sm:$0xff]
      %v306 = vld [vmem:[%s161 + $0x408] sm:$0xff]
      %v307 = vld [vmem:[%s161 + $0x410] sm:$0xff]
      %v308 = vld [vmem:[%s161 + $0x418] sm:$0xff]
      %v309 = vld [vmem:[%s161 + $0x420] sm:$0xff]
      %v310 = vld [vmem:[%s161 + $0x428] sm:$0xff]
      %v311 = vld [vmem:[%s161 + $0x430] sm:$0xff]
      %v312 = vld [vmem:[%s161 + $0x438] sm:$0xff]
      %v313 = vld [vmem:[%s161 + $0x440] sm:$0xff]
      %v314 = vld [vmem:[%s161 + $0x448] sm:$0xff]
      %v315 = vld [vmem:[%s161 + $0x450] sm:$0xff]
      %v316 = vld [vmem:[%s161 + $0x458] sm:$0xff]
      %v317 = vld [vmem:[%s161 + $0x460] sm:$0xff]
      %v318 = vld [vmem:[%s161 + $0x468] sm:$0xff]
      %v319 = vld [vmem:[%s161 + $0x470] sm:$0xff]
      %v320 = vld [vmem:[%s161 + $0x478] sm:$0xff]
      %v321 = vld [vmem:[%s161 + $0x480] sm:$0xff]
      %v322 = vld [vmem:[%s161 + $0x488] sm:$0xff]
      %v323 = vld [vmem:[%s161 + $0x490] sm:$0xff]
      %v324 = vld [vmem:[%s161 + $0x498] sm:$0xff]
      %v325 = vld [vmem:[%s161 + $0x4a0] sm:$0xff]
      %v326 = vld [vmem:[%s161 + $0x4a8] sm:$0xff]
      %v327 = vld [vmem:[%s161 + $0x4b0] sm:$0xff]
      %v328 = vld [vmem:[%s161 + $0x4b8] sm:$0xff]
      %v329 = vld [vmem:[%s161 + $0x4c0] sm:$0xff]
      %v330 = vld [vmem:[%s161 + $0x4c8] sm:$0xff]
      %v331 = vld [vmem:[%s161 + $0x4d0] sm:$0xff]
      %v332 = vld [vmem:[%s161 + $0x4d8] sm:$0xff]
      %v333 = vld [vmem:[%s161 + $0x4e0] sm:$0xff]
      %v334 = vld [vmem:[%s161 + $0x4e8] sm:$0xff]
      %v335 = vld [vmem:[%s161 + $0x4f0] sm:$0xff]
      %v336 = vld [vmem:[%s161 + $0x4f8] sm:$0xff]
      %v337 = vld [vmem:[%s161 + $0x500] sm:$0xff]
      %v338 = vld [vmem:[%s161 + $0x508] sm:$0xff]
      %v339 = vld [vmem:[%s161 + $0x510] sm:$0xff]
      %v340 = vld [vmem:[%s161 + $0x518] sm:$0xff]
      %v341 = vld [vmem:[%s161 + $0x520] sm:$0xff]
      %v342 = vld [vmem:[%s161 + $0x528] sm:$0xff]
      %v343 = vld [vmem:[%s161 + $0x530] sm:$0xff]
      %v344 = vld [vmem:[%s161 + $0x538] sm:$0xff]
      %v345 = vld [vmem:[%s161 + $0x540] sm:$0xff]
      %v346 = vld [vmem:[%s161 + $0x548] sm:$0xff]
      %v347 = vld [vmem:[%s161 + $0x550] sm:$0xff]
      %v348 = vld [vmem:[%s161 + $0x558] sm:$0xff]
      %v349 = vld [vmem:[%s161 + $0x560] sm:$0xff]
      %v350 = vld [vmem:[%s161 + $0x568] sm:$0xff]
      %v351 = vld [vmem:[%s161 + $0x570] sm:$0xff]
      %v352 = vld [vmem:[%s161 + $0x578] sm:$0xff]
      %v353 = vld [vmem:[%s161 + $0x580] sm:$0xff]
      %v354 = vld [vmem:[%s161 + $0x588] sm:$0xff]
      %v355 = vld [vmem:[%s161 + $0x590] sm:$0xff]
      %v356 = vld [vmem:[%s161 + $0x598] sm:$0xff]
      %v357 = vld [vmem:[%s161 + $0x5a0] sm:$0xff]
      %v358 = vld [vmem:[%s161 + $0x5a8] sm:$0xff]
      %v359 = vld [vmem:[%s161 + $0x5b0] sm:$0xff]
      %v360 = vld [vmem:[%s161 + $0x5b8] sm:$0xff]
      %v361 = vld [vmem:[%s161 + $0x5c0] sm:$0xff]
      %v362 = vld [vmem:[%s161 + $0x5c8] sm:$0xff]
      %v363 = vld [vmem:[%s161 + $0x5d0] sm:$0xff]
      %v364 = vld [vmem:[%s161 + $0x5d8] sm:$0xff]
      %v365 = vld [vmem:[%s161 + $0x5e0] sm:$0xff]
      %v366 = vld [vmem:[%s161 + $0x5e8] sm:$0xff]
      %v367 = vld [vmem:[%s161 + $0x5f0] sm:$0xff]
      %v368 = vld [vmem:[%s161 + $0x5f8] sm:$0xff]
      %v369 = vld [vmem:[%s161 + $0x600] sm:$0xff]
      %v370 = vld [vmem:[%s161 + $0x608] sm:$0xff]
      %v371 = vld [vmem:[%s161 + $0x610] sm:$0xff]
      %v372 = vld [vmem:[%s161 + $0x618] sm:$0xff]
      %v373 = vld [vmem:[%s161 + $0x620] sm:$0xff]
      %v374 = vld [vmem:[%s161 + $0x628] sm:$0xff]
      %v375 = vld [vmem:[%s161 + $0x630] sm:$0xff]
      %v376 = vld [vmem:[%s161 + $0x638] sm:$0xff]
      %v377 = vld [vmem:[%s161 + $0x640] sm:$0xff]
      %v378 = vld [vmem:[%s161 + $0x648] sm:$0xff]
      %v379 = vld [vmem:[%s161 + $0x650] sm:$0xff]
      %v380 = vld [vmem:[%s161 + $0x658] sm:$0xff]
      %v381 = vld [vmem:[%s161 + $0x660] sm:$0xff]
      %v382 = vld [vmem:[%s161 + $0x668] sm:$0xff]
      %v383 = vld [vmem:[%s161 + $0x670] sm:$0xff]
      %v384 = vld [vmem:[%s161 + $0x678] sm:$0xff]
      %v385 = vld [vmem:[%s161 + $0x680] sm:$0xff]
      %v386 = vld [vmem:[%s161 + $0x688] sm:$0xff]
      %v387 = vld [vmem:[%s161 + $0x690] sm:$0xff]
      %v388 = vld [vmem:[%s161 + $0x698] sm:$0xff]
      %v389 = vld [vmem:[%s161 + $0x6a0] sm:$0xff]
      %v390 = vld [vmem:[%s161 + $0x6a8] sm:$0xff]
      %v391 = vld [vmem:[%s161 + $0x6b0] sm:$0xff]
      %v392 = vld [vmem:[%s161 + $0x6b8] sm:$0xff]
      %v393 = vld [vmem:[%s161 + $0x6c0] sm:$0xff]
      %v394 = vld [vmem:[%s161 + $0x6c8] sm:$0xff]
      %v395 = vld [vmem:[%s161 + $0x6d0] sm:$0xff]
      %v396 = vld [vmem:[%s161 + $0x6d8] sm:$0xff]
      %v397 = vld [vmem:[%s161 + $0x6e0] sm:$0xff]
      %v398 = vld [vmem:[%s161 + $0x6e8] sm:$0xff]
      %v399 = vld [vmem:[%s161 + $0x6f0] sm:$0xff]
      %v400 = vld [vmem:[%s161 + $0x6f8] sm:$0xff]
      %v401 = vld [vmem:[%s161 + $0x700] sm:$0xff]
      %v402 = vld [vmem:[%s161 + $0x708] sm:$0xff]
      %v403 = vld [vmem:[%s161 + $0x710] sm:$0xff]
      %v404 = vld [vmem:[%s161 + $0x718] sm:$0xff]
      %v405 = vld [vmem:[%s161 + $0x720] sm:$0xff]
      %v406 = vld [vmem:[%s161 + $0x728] sm:$0xff]
      %v407 = vld [vmem:[%s161 + $0x730] sm:$0xff]
      %v408 = vld [vmem:[%s161 + $0x738] sm:$0xff]
      %v409 = vld [vmem:[%s161 + $0x740] sm:$0xff]
      %v410 = vld [vmem:[%s161 + $0x748] sm:$0xff]
      %v411 = vld [vmem:[%s161 + $0x750] sm:$0xff]
      %v412 = vld [vmem:[%s161 + $0x758] sm:$0xff]
      %v413 = vld [vmem:[%s161 + $0x760] sm:$0xff]
      %v414 = vld [vmem:[%s161 + $0x768] sm:$0xff]
      %v415 = vld [vmem:[%s161 + $0x770] sm:$0xff]
      %v416 = vld [vmem:[%s161 + $0x778] sm:$0xff]
      %v417 = vld [vmem:[%s161 + $0x780] sm:$0xff]
      %v418 = vld [vmem:[%s161 + $0x788] sm:$0xff]
      %v419 = vld [vmem:[%s161 + $0x790] sm:$0xff]
      %v420 = vld [vmem:[%s161 + $0x798] sm:$0xff]
      %v421 = vld [vmem:[%s161 + $0x7a0] sm:$0xff]
      %v422 = vld [vmem:[%s161 + $0x7a8] sm:$0xff]
      %v423 = vld [vmem:[%s161 + $0x7b0] sm:$0xff]
      %v424 = vld [vmem:[%s161 + $0x7b8] sm:$0xff]
      %v425 = vld [vmem:[%s161 + $0x7c0] sm:$0xff]
      %v426 = vld [vmem:[%s161 + $0x7c8] sm:$0xff]
      %v427 = vld [vmem:[%s161 + $0x7d0] sm:$0xff]
      %v428 = vld [vmem:[%s161 + $0x7d8] sm:$0xff]
      %v429 = vld [vmem:[%s161 + $0x7e0] sm:$0xff]
      %v430 = vld [vmem:[%s161 + $0x7e8] sm:$0xff]
      %v431 = vld [vmem:[%s161 + $0x7f0] sm:$0xff]
      %v432 = vld [vmem:[%s161 + $0x7f8] sm:$0xff]
      %v433 = vld [vmem:[%s161 + $0x800] sm:$0xff]
      %v434 = vld [vmem:[%s161 + $0x808] sm:$0xff]
      %v435 = vld [vmem:[%s161 + $0x810] sm:$0xff]
      %v436 = vld [vmem:[%s161 + $0x818] sm:$0xff]
      %v437 = vld [vmem:[%s161 + $0x820] sm:$0xff]
      %v438 = vld [vmem:[%s161 + $0x828] sm:$0xff]
      %v439 = vld [vmem:[%s161 + $0x830] sm:$0xff]
      %v440 = vld [vmem:[%s161 + $0x838] sm:$0xff]
      %v441 = vld [vmem:[%s161 + $0x840] sm:$0xff]
      %v442 = vld [vmem:[%s161 + $0x848] sm:$0xff]
      %v443 = vld [vmem:[%s161 + $0x850] sm:$0xff]
      %v444 = vld [vmem:[%s161 + $0x858] sm:$0xff]
      %v445 = vld [vmem:[%s161 + $0x860] sm:$0xff]
      %v446 = vld [vmem:[%s161 + $0x868] sm:$0xff]
      %v447 = vld [vmem:[%s161 + $0x870] sm:$0xff]
      %v448 = vld [vmem:[%s161 + $0x878] sm:$0xff]
      %v449 = vld [vmem:[%s161 + $0x880] sm:$0xff]
      %v450 = vld [vmem:[%s161 + $0x888] sm:$0xff]
      %v451 = vld [vmem:[%s161 + $0x890] sm:$0xff]
      %v452 = vld [vmem:[%s161 + $0x898] sm:$0xff]
      %v453 = vld [vmem:[%s161 + $0x8a0] sm:$0xff]
      %v454 = vld [vmem:[%s161 + $0x8a8] sm:$0xff]
      %v455 = vld [vmem:[%s168] sm:$0xff]
      %v456 = vld [vmem:[%s168 + $0x8] sm:$0xff]
      %v457 = vld [vmem:[%s168 + $0x10] sm:$0xff]
      %v458 = vld [vmem:[%s168 + $0x18] sm:$0xff]
      %v459 = vld [vmem:[%s168 + $0x20] sm:$0xff]
      %v460 = vld [vmem:[%s168 + $0x28] sm:$0xff]
      %v461 = vld [vmem:[%s168 + $0x30] sm:$0xff]
      %v462 = vld [vmem:[%s168 + $0x38] sm:$0xff]
      %v463 = vld [vmem:[%s168 + $0x40] sm:$0xff]
      %v464 = vld [vmem:[%s168 + $0x48] sm:$0xff]
      %v465 = vld [vmem:[%s168 + $0x50] sm:$0xff]
      %v466 = vld [vmem:[%s168 + $0x58] sm:$0xff]
      %v467 = vld [vmem:[%s168 + $0x60] sm:$0xff]
      %v468 = vld [vmem:[%s168 + $0x68] sm:$0xff]
      %v469 = vld [vmem:[%s168 + $0x70] sm:$0xff]
      %v470 = vld [vmem:[%s168 + $0x78] sm:$0xff]
      %v471 = vld [vmem:[%s168 + $0x80] sm:$0xff]
      %v472 = vld [vmem:[%s168 + $0x88] sm:$0xff]
      %v473 = vld [vmem:[%s168 + $0x90] sm:$0xff]
      %v474 = vld [vmem:[%s168 + $0x98] sm:$0xff]
      %v475 = vld [vmem:[%s168 + $0xa0] sm:$0xff]
      %v476 = vld [vmem:[%s168 + $0xa8] sm:$0xff]
      %v477 = vld [vmem:[%s168 + $0xb0] sm:$0xff]
      %v478 = vld [vmem:[%s168 + $0xb8] sm:$0xff]
      %v479 = vld [vmem:[%s168 + $0xc0] sm:$0xff]
      %v480 = vld [vmem:[%s168 + $0xc8] sm:$0xff]
      %v481 = vld [vmem:[%s168 + $0xd0] sm:$0xff]
      %v482 = vld [vmem:[%s168 + $0xd8] sm:$0xff]
      %v483 = vld [vmem:[%s168 + $0xe0] sm:$0xff]
      %v484 = vld [vmem:[%s168 + $0xe8] sm:$0xff]
      %v485 = vld [vmem:[%s168 + $0xf0] sm:$0xff]
      %v486 = vld [vmem:[%s168 + $0xf8] sm:$0xff]
      %v487 = vld [vmem:[%s168 + $0x100] sm:$0xff]
      %v488 = vld [vmem:[%s168 + $0x108] sm:$0xff]
      %v489 = vld [vmem:[%s168 + $0x110] sm:$0xff]
      %v490 = vld [vmem:[%s168 + $0x118] sm:$0xff]
      %v491 = vld [vmem:[%s168 + $0x120] sm:$0xff]
      %v492 = vld [vmem:[%s168 + $0x128] sm:$0xff]
      %v493 = vld [vmem:[%s168 + $0x130] sm:$0xff]
      %v494 = vld [vmem:[%s168 + $0x138] sm:$0xff]
      %v495 = vld [vmem:[%s168 + $0x140] sm:$0xff]
      %v496 = vld [vmem:[%s168 + $0x148] sm:$0xff]
      %v497 = vld [vmem:[%s168 + $0x150] sm:$0xff]
      %v498 = vld [vmem:[%s168 + $0x158] sm:$0xff]
      %v499 = vld [vmem:[%s168 + $0x160] sm:$0xff]
      %v500 = vld [vmem:[%s168 + $0x168] sm:$0xff]
      %v501 = vld [vmem:[%s168 + $0x170] sm:$0xff]
      %v502 = vld [vmem:[%s168 + $0x178] sm:$0xff]
      %v503 = vld [vmem:[%s168 + $0x180] sm:$0xff]
      %v504 = vld [vmem:[%s168 + $0x188] sm:$0xff]
      %v505 = vld [vmem:[%s168 + $0x190] sm:$0xff]
      %v506 = vld [vmem:[%s168 + $0x198] sm:$0xff]
      %v507 = vld [vmem:[%s168 + $0x1a0] sm:$0xff]
      %v508 = vld [vmem:[%s168 + $0x1a8] sm:$0xff]
      %v509 = vld [vmem:[%s168 + $0x1b0] sm:$0xff]
      %v510 = vld [vmem:[%s168 + $0x1b8] sm:$0xff]
      %v511 = vld [vmem:[%s168 + $0x1c0] sm:$0xff]
      %v512 = vld [vmem:[%s168 + $0x1c8] sm:$0xff]
      %v513 = vld [vmem:[%s168 + $0x1d0] sm:$0xff]
      %v514 = vld [vmem:[%s168 + $0x1d8] sm:$0xff]
      %v515 = vld [vmem:[%s168 + $0x1e0] sm:$0xff]
      %v516 = vld [vmem:[%s168 + $0x1e8] sm:$0xff]
      %v517 = vld [vmem:[%s168 + $0x1f0] sm:$0xff]
      %v518 = vld [vmem:[%s168 + $0x1f8] sm:$0xff]
      %v519 = vld [vmem:[%s168 + $0x200] sm:$0xff]
      %v520 = vld [vmem:[%s168 + $0x208] sm:$0xff]
      %v521 = vld [vmem:[%s168 + $0x210] sm:$0xff]
      %v522 = vld [vmem:[%s168 + $0x218] sm:$0xff]
      %v523 = vld [vmem:[%s168 + $0x220] sm:$0xff]
      %v524 = vld [vmem:[%s168 + $0x228] sm:$0xff]
      %v525 = vld [vmem:[%s168 + $0x230] sm:$0xff]
      %v526 = vld [vmem:[%s168 + $0x238] sm:$0xff]
      %v527 = vld [vmem:[%s168 + $0x240] sm:$0xff]
      %v528 = vld [vmem:[%s168 + $0x248] sm:$0xff]
      %v529 = vld [vmem:[%s168 + $0x250] sm:$0xff]
      %v530 = vld [vmem:[%s168 + $0x258] sm:$0xff]
      %v531 = vld [vmem:[%s168 + $0x260] sm:$0xff]
      %v532 = vld [vmem:[%s168 + $0x268] sm:$0xff]
      %v533 = vld [vmem:[%s168 + $0x270] sm:$0xff]
      %v534 = vld [vmem:[%s168 + $0x278] sm:$0xff]
      %v535 = vld [vmem:[%s168 + $0x280] sm:$0xff]
      %v536 = vld [vmem:[%s168 + $0x288] sm:$0xff]
      %v537 = vld [vmem:[%s168 + $0x290] sm:$0xff]
      %v538 = vld [vmem:[%s168 + $0x298] sm:$0xff]
      %v539 = vld [vmem:[%s168 + $0x2a0] sm:$0xff]
      %v540 = vld [vmem:[%s168 + $0x2a8] sm:$0xff]
      %v541 = vld [vmem:[%s168 + $0x2b0] sm:$0xff]
      %v542 = vld [vmem:[%s168 + $0x2b8] sm:$0xff]
      %v543 = vld [vmem:[%s168 + $0x2c0] sm:$0xff]
      %v544 = vld [vmem:[%s168 + $0x2c8] sm:$0xff]
      %v545 = vld [vmem:[%s168 + $0x2d0] sm:$0xff]
      %v546 = vld [vmem:[%s168 + $0x2d8] sm:$0xff]
      %v547 = vld [vmem:[%s168 + $0x2e0] sm:$0xff]
      %v548 = vld [vmem:[%s168 + $0x2e8] sm:$0xff]
      %v549 = vld [vmem:[%s168 + $0x2f0] sm:$0xff]
      %v550 = vld [vmem:[%s168 + $0x2f8] sm:$0xff]
      %v551 = vld [vmem:[%s168 + $0x300] sm:$0xff]
      %v552 = vld [vmem:[%s168 + $0x308] sm:$0xff]
      %v553 = vld [vmem:[%s168 + $0x310] sm:$0xff]
      %v554 = vld [vmem:[%s168 + $0x318] sm:$0xff]
      %v555 = vld [vmem:[%s168 + $0x320] sm:$0xff]
      %v556 = vld [vmem:[%s168 + $0x328] sm:$0xff]
      %v557 = vld [vmem:[%s168 + $0x330] sm:$0xff]
      %v558 = vld [vmem:[%s168 + $0x338] sm:$0xff]
      %v559 = vld [vmem:[%s168 + $0x340] sm:$0xff]
      %v560 = vld [vmem:[%s168 + $0x348] sm:$0xff]
      %v561 = vld [vmem:[%s168 + $0x350] sm:$0xff]
      %v562 = vld [vmem:[%s168 + $0x358] sm:$0xff]
      %v563 = vld [vmem:[%s168 + $0x360] sm:$0xff]
      %v564 = vld [vmem:[%s168 + $0x368] sm:$0xff]
      %v565 = vld [vmem:[%s168 + $0x370] sm:$0xff]
      %v566 = vld [vmem:[%s168 + $0x378] sm:$0xff]
      %v567 = vld [vmem:[%s168 + $0x380] sm:$0xff]
      %v568 = vld [vmem:[%s168 + $0x388] sm:$0xff]
      %v569 = vld [vmem:[%s168 + $0x390] sm:$0xff]
      %v570 = vld [vmem:[%s168 + $0x398] sm:$0xff]
      %v571 = vld [vmem:[%s168 + $0x3a0] sm:$0xff]
      %v572 = vld [vmem:[%s168 + $0x3a8] sm:$0xff]
      %v573 = vld [vmem:[%s168 + $0x3b0] sm:$0xff]
      %v574 = vld [vmem:[%s168 + $0x3b8] sm:$0xff]
      %v575 = vld [vmem:[%s168 + $0x3c0] sm:$0xff]
      %v576 = vld [vmem:[%s168 + $0x3c8] sm:$0xff]
      %v577 = vld [vmem:[%s168 + $0x3d0] sm:$0xff]
      %v578 = vld [vmem:[%s168 + $0x3d8] sm:$0xff]
      %v579 = vld [vmem:[%s168 + $0x3e0] sm:$0xff]
      %v580 = vld [vmem:[%s168 + $0x3e8] sm:$0xff]
      %v581 = vld [vmem:[%s168 + $0x3f0] sm:$0xff]
      %v582 = vld [vmem:[%s168 + $0x3f8] sm:$0xff]
      %v583 = vld [vmem:[%s168 + $0x400] sm:$0xff]
      %v584 = vld [vmem:[%s168 + $0x408] sm:$0xff]
      %v585 = vld [vmem:[%s168 + $0x410] sm:$0xff]
      %v586 = vld [vmem:[%s168 + $0x418] sm:$0xff]
      %v587 = vld [vmem:[%s168 + $0x420] sm:$0xff]
      %v588 = vld [vmem:[%s168 + $0x428] sm:$0xff]
      %v589 = vld [vmem:[%s168 + $0x430] sm:$0xff]
      %v590 = vld [vmem:[%s168 + $0x438] sm:$0xff]
      %v591 = vld [vmem:[%s168 + $0x440] sm:$0xff]
      %v592 = vld [vmem:[%s168 + $0x448] sm:$0xff]
      %v593 = vld [vmem:[%s168 + $0x450] sm:$0xff]
      %v594 = vld [vmem:[%s168 + $0x458] sm:$0xff]
      %v595 = vld [vmem:[%s168 + $0x460] sm:$0xff]
      %v596 = vld [vmem:[%s168 + $0x468] sm:$0xff]
      %v597 = vld [vmem:[%s168 + $0x470] sm:$0xff]
      %v598 = vld [vmem:[%s168 + $0x478] sm:$0xff]
      %v599 = vld [vmem:[%s168 + $0x480] sm:$0xff]
      %v600 = vld [vmem:[%s168 + $0x488] sm:$0xff]
      %v601 = vld [vmem:[%s168 + $0x490] sm:$0xff]
      %v602 = vld [vmem:[%s168 + $0x498] sm:$0xff]
      %v603 = vld [vmem:[%s168 + $0x4a0] sm:$0xff]
      %v604 = vld [vmem:[%s168 + $0x4a8] sm:$0xff]
      %v605 = vld [vmem:[%s168 + $0x4b0] sm:$0xff]
      %v606 = vld [vmem:[%s168 + $0x4b8] sm:$0xff]
      %v607 = vld [vmem:[%s168 + $0x4c0] sm:$0xff]
      %v608 = vld [vmem:[%s168 + $0x4c8] sm:$0xff]
      %v609 = vld [vmem:[%s168 + $0x4d0] sm:$0xff]
      %v610 = vld [vmem:[%s168 + $0x4d8] sm:$0xff]
      %v611 = vld [vmem:[%s168 + $0x4e0] sm:$0xff]
      %v612 = vld [vmem:[%s168 + $0x4e8] sm:$0xff]
      %v613 = vld [vmem:[%s168 + $0x4f0] sm:$0xff]
      %v614 = vld [vmem:[%s168 + $0x4f8] sm:$0xff]
      %v615 = vld [vmem:[%s168 + $0x500] sm:$0xff]
      %v616 = vld [vmem:[%s168 + $0x508] sm:$0xff]
      %v617 = vld [vmem:[%s168 + $0x510] sm:$0xff]
      %v618 = vld [vmem:[%s168 + $0x518] sm:$0xff]
      %v619 = vld [vmem:[%s168 + $0x520] sm:$0xff]
      %v620 = vld [vmem:[%s168 + $0x528] sm:$0xff]
      %v621 = vld [vmem:[%s168 + $0x530] sm:$0xff]
      %v622 = vld [vmem:[%s168 + $0x538] sm:$0xff]
      %v623 = vld [vmem:[%s168 + $0x540] sm:$0xff]
      %v624 = vld [vmem:[%s168 + $0x548] sm:$0xff]
      %v625 = vld [vmem:[%s168 + $0x550] sm:$0xff]
      %v626 = vld [vmem:[%s168 + $0x558] sm:$0xff]
      %v627 = vld [vmem:[%s168 + $0x560] sm:$0xff]
      %v628 = vld [vmem:[%s168 + $0x568] sm:$0xff]
      %v629 = vld [vmem:[%s168 + $0x570] sm:$0xff]
      %v630 = vld [vmem:[%s168 + $0x578] sm:$0xff]
      %v631 = vld [vmem:[%s168 + $0x580] sm:$0xff]
      %v632 = vld [vmem:[%s168 + $0x588] sm:$0xff]
      %v633 = vld [vmem:[%s168 + $0x590] sm:$0xff]
      %v634 = vld [vmem:[%s168 + $0x598] sm:$0xff]
      %v635 = vld [vmem:[%s168 + $0x5a0] sm:$0xff]
      %v636 = vld [vmem:[%s168 + $0x5a8] sm:$0xff]
      %v637 = vld [vmem:[%s168 + $0x5b0] sm:$0xff]
      %v638 = vld [vmem:[%s168 + $0x5b8] sm:$0xff]
      %v639 = vld [vmem:[%s168 + $0x5c0] sm:$0xff]
      %v640 = vld [vmem:[%s168 + $0x5c8] sm:$0xff]
      %v641 = vld [vmem:[%s168 + $0x5d0] sm:$0xff]
      %v642 = vld [vmem:[%s168 + $0x5d8] sm:$0xff]
      %v643 = vld [vmem:[%s168 + $0x5e0] sm:$0xff]
      %v644 = vld [vmem:[%s168 + $0x5e8] sm:$0xff]
      %v645 = vld [vmem:[%s168 + $0x5f0] sm:$0xff]
      %v646 = vld [vmem:[%s168 + $0x5f8] sm:$0xff]
      %v647 = vld [vmem:[%s168 + $0x600] sm:$0xff]
      %v648 = vld [vmem:[%s168 + $0x608] sm:$0xff]
      %v649 = vld [vmem:[%s168 + $0x610] sm:$0xff]
      %v650 = vld [vmem:[%s168 + $0x618] sm:$0xff]
      %v651 = vld [vmem:[%s168 + $0x620] sm:$0xff]
      %v652 = vld [vmem:[%s168 + $0x628] sm:$0xff]
      %v653 = vld [vmem:[%s168 + $0x630] sm:$0xff]
      %v654 = vld [vmem:[%s168 + $0x638] sm:$0xff]
      %v655 = vld [vmem:[%s168 + $0x640] sm:$0xff]
      %v656 = vld [vmem:[%s168 + $0x648] sm:$0xff]
      %v657 = vld [vmem:[%s168 + $0x650] sm:$0xff]
      %v658 = vld [vmem:[%s168 + $0x658] sm:$0xff]
      %v659 = vld [vmem:[%s168 + $0x660] sm:$0xff]
      %v660 = vld [vmem:[%s168 + $0x668] sm:$0xff]
      %v661 = vld [vmem:[%s168 + $0x670] sm:$0xff]
      %v662 = vld [vmem:[%s168 + $0x678] sm:$0xff]
      %v663 = vld [vmem:[%s168 + $0x680] sm:$0xff]
      %v664 = vld [vmem:[%s168 + $0x688] sm:$0xff]
      %v665 = vld [vmem:[%s168 + $0x690] sm:$0xff]
      %v666 = vld [vmem:[%s168 + $0x698] sm:$0xff]
      %v667 = vld [vmem:[%s168 + $0x6a0] sm:$0xff]
      %v668 = vld [vmem:[%s168 + $0x6a8] sm:$0xff]
      %v669 = vld [vmem:[%s168 + $0x6b0] sm:$0xff]
      %v670 = vld [vmem:[%s168 + $0x6b8] sm:$0xff]
      %v671 = vld [vmem:[%s168 + $0x6c0] sm:$0xff]
      %v672 = vld [vmem:[%s168 + $0x6c8] sm:$0xff]
      %v673 = vld [vmem:[%s168 + $0x6d0] sm:$0xff]
      %v674 = vld [vmem:[%s168 + $0x6d8] sm:$0xff]
      %v675 = vld [vmem:[%s168 + $0x6e0] sm:$0xff]
      %v676 = vld [vmem:[%s168 + $0x6e8] sm:$0xff]
      %v677 = vld [vmem:[%s168 + $0x6f0] sm:$0xff]
      %v678 = vld [vmem:[%s168 + $0x6f8] sm:$0xff]
      %v679 = vld [vmem:[%s168 + $0x700] sm:$0xff]
      %v680 = vld [vmem:[%s168 + $0x708] sm:$0xff]
      %v681 = vld [vmem:[%s168 + $0x710] sm:$0xff]
      %v682 = vld [vmem:[%s168 + $0x718] sm:$0xff]
      %v683 = vld [vmem:[%s168 + $0x720] sm:$0xff]
      %v684 = vld [vmem:[%s168 + $0x728] sm:$0xff]
      %v685 = vld [vmem:[%s168 + $0x730] sm:$0xff]
      %v686 = vld [vmem:[%s168 + $0x738] sm:$0xff]
      %v687 = vld [vmem:[%s168 + $0x740] sm:$0xff]
      %v688 = vld [vmem:[%s168 + $0x748] sm:$0xff]
      %v689 = vld [vmem:[%s168 + $0x750] sm:$0xff]
      %v690 = vld [vmem:[%s168 + $0x758] sm:$0xff]
      %v691 = vld [vmem:[%s168 + $0x760] sm:$0xff]
      %v692 = vld [vmem:[%s168 + $0x768] sm:$0xff]
      %v693 = vld [vmem:[%s168 + $0x770] sm:$0xff]
      %v694 = vld [vmem:[%s168 + $0x778] sm:$0xff]
      %v695 = vld [vmem:[%s168 + $0x780] sm:$0xff]
      %v696 = vld [vmem:[%s168 + $0x788] sm:$0xff]
      %v697 = vld [vmem:[%s168 + $0x790] sm:$0xff]
      %v698 = vld [vmem:[%s168 + $0x798] sm:$0xff]
      %v699 = vld [vmem:[%s168 + $0x7a0] sm:$0xff]
      %v700 = vld [vmem:[%s168 + $0x7a8] sm:$0xff]
      %v701 = vld [vmem:[%s168 + $0x7b0] sm:$0xff]
      %v702 = vld [vmem:[%s168 + $0x7b8] sm:$0xff]
      %v703 = vld [vmem:[%s168 + $0x7c0] sm:$0xff]
      %v704 = vld [vmem:[%s168 + $0x7c8] sm:$0xff]
      %v705 = vld [vmem:[%s168 + $0x7d0] sm:$0xff]
      %v706 = vld [vmem:[%s168 + $0x7d8] sm:$0xff]
      %v707 = vld [vmem:[%s168 + $0x7e0] sm:$0xff]
      %v708 = vld [vmem:[%s168 + $0x7e8] sm:$0xff]
      %v709 = vld [vmem:[%s168 + $0x7f0] sm:$0xff]
      %v710 = vld [vmem:[%s168 + $0x7f8] sm:$0xff]
      %v711 = vld [vmem:[%s168 + $0x800] sm:$0xff]
      %v712 = vld [vmem:[%s168 + $0x808] sm:$0xff]
      %v713 = vld [vmem:[%s168 + $0x810] sm:$0xff]
      %v714 = vld [vmem:[%s168 + $0x818] sm:$0xff]
      %v715 = vld [vmem:[%s168 + $0x820] sm:$0xff]
      %v716 = vld [vmem:[%s168 + $0x828] sm:$0xff]
      %v717 = vld [vmem:[%s168 + $0x830] sm:$0xff]
      %v718 = vld [vmem:[%s168 + $0x838] sm:$0xff]
      %v719 = vld [vmem:[%s168 + $0x840] sm:$0xff]
      %v720 = vld [vmem:[%s168 + $0x848] sm:$0xff]
      %v721 = vld [vmem:[%s168 + $0x850] sm:$0xff]
      %v722 = vld [vmem:[%s168 + $0x858] sm:$0xff]
      %v723 = vld [vmem:[%s168 + $0x860] sm:$0xff]
      %v724 = vld [vmem:[%s168 + $0x868] sm:$0xff]
      %v725 = vld [vmem:[%s168 + $0x870] sm:$0xff]
      %v726 = vld [vmem:[%s168 + $0x878] sm:$0xff]
      %v727 = vld [vmem:[%s168 + $0x880] sm:$0xff]
      %v728 = vld [vmem:[%s168 + $0x888] sm:$0xff]
      %v729 = vld [vmem:[%s168 + $0x890] sm:$0xff]
      %v730 = vld [vmem:[%s168 + $0x898] sm:$0xff]
      %v731 = vld [vmem:[%s168 + $0x8a0] sm:$0xff]
      %v732 = vld [vmem:[%s168 + $0x8a8] sm:$0xff]
      %v733 = vadd.f32 %v177, %v455
      %v734 = vadd.f32 %v178, %v456
      %v735 = vadd.f32 %v179, %v457
      %v736 = vadd.f32 %v180, %v458
      %v737 = vadd.f32 %v181, %v459
      %v738 = vadd.f32 %v182, %v460
      %v739 = vadd.f32 %v183, %v461
      %v740 = vadd.f32 %v184, %v462
      %v741 = vadd.f32 %v185, %v463
      %v742 = vadd.f32 %v186, %v464
      %v743 = vadd.f32 %v187, %v465
      %v744 = vadd.f32 %v188, %v466
      %v745 = vadd.f32 %v189, %v467
      %v746 = vadd.f32 %v190, %v468
      %v747 = vadd.f32 %v191, %v469
      %v748 = vadd.f32 %v192, %v470
      %v749 = vadd.f32 %v193, %v471
      %v750 = vadd.f32 %v194, %v472
      %v751 = vadd.f32 %v195, %v473
      %v752 = vadd.f32 %v196, %v474
      %v753 = vadd.f32 %v197, %v475
      %v754 = vadd.f32 %v198, %v476
      %v755 = vadd.f32 %v199, %v477
      %v756 = vadd.f32 %v200, %v478
      %v757 = vadd.f32 %v201, %v479
      %v758 = vadd.f32 %v202, %v480
      %v759 = vadd.f32 %v203, %v481
      %v760 = vadd.f32 %v204, %v482
      %v761 = vadd.f32 %v205, %v483
      %v762 = vadd.f32 %v206, %v484
      %v763 = vadd.f32 %v207, %v485
      %v764 = vadd.f32 %v208, %v486
      %v765 = vadd.f32 %v209, %v487
      %v766 = vadd.f32 %v210, %v488
      %v767 = vadd.f32 %v211, %v489
      %v768 = vadd.f32 %v212, %v490
      %v769 = vadd.f32 %v213, %v491
      %v770 = vadd.f32 %v214, %v492
      %v771 = vadd.f32 %v215, %v493
      %v772 = vadd.f32 %v216, %v494
      %v773 = vadd.f32 %v217, %v495
      %v774 = vadd.f32 %v218, %v496
      %v775 = vadd.f32 %v219, %v497
      %v776 = vadd.f32 %v220, %v498
      %v777 = vadd.f32 %v221, %v499
      %v778 = vadd.f32 %v222, %v500
      %v779 = vadd.f32 %v223, %v501
      %v780 = vadd.f32 %v224, %v502
      %v781 = vadd.f32 %v225, %v503
      %v782 = vadd.f32 %v226, %v504
      %v783 = vadd.f32 %v227, %v505
      %v784 = vadd.f32 %v228, %v506
      %v785 = vadd.f32 %v229, %v507
      %v786 = vadd.f32 %v230, %v508
      %v787 = vadd.f32 %v231, %v509
      %v788 = vadd.f32 %v232, %v510
      %v789 = vadd.f32 %v233, %v511
      %v790 = vadd.f32 %v234, %v512
      %v791 = vadd.f32 %v235, %v513
      %v792 = vadd.f32 %v236, %v514
      %v793 = vadd.f32 %v237, %v515
      %v794 = vadd.f32 %v238, %v516
      %v795 = vadd.f32 %v239, %v517
      %v796 = vadd.f32 %v240, %v518
      %v797 = vadd.f32 %v241, %v519
      %v798 = vadd.f32 %v242, %v520
      %v799 = vadd.f32 %v243, %v521
      %v800 = vadd.f32 %v244, %v522
      %v801 = vadd.f32 %v245, %v523
      %v802 = vadd.f32 %v246, %v524
      %v803 = vadd.f32 %v247, %v525
      %v804 = vadd.f32 %v248, %v526
      %v805 = vadd.f32 %v249, %v527
      %v806 = vadd.f32 %v250, %v528
      %v807 = vadd.f32 %v251, %v529
      %v808 = vadd.f32 %v252, %v530
      %v809 = vadd.f32 %v253, %v531
      %v810 = vadd.f32 %v254, %v532
      %v811 = vadd.f32 %v255, %v533
      %v812 = vadd.f32 %v256, %v534
      %v813 = vadd.f32 %v257, %v535
      %v814 = vadd.f32 %v258, %v536
      %v815 = vadd.f32 %v259, %v537
      %v816 = vadd.f32 %v260, %v538
      %v817 = vadd.f32 %v261, %v539
      %v818 = vadd.f32 %v262, %v540
      %v819 = vadd.f32 %v263, %v541
      %v820 = vadd.f32 %v264, %v542
      %v821 = vadd.f32 %v265, %v543
      %v822 = vadd.f32 %v266, %v544
      %v823 = vadd.f32 %v267, %v545
      %v824 = vadd.f32 %v268, %v546
      %v825 = vadd.f32 %v269, %v547
      %v826 = vadd.f32 %v270, %v548
      %v827 = vadd.f32 %v271, %v549
      %v828 = vadd.f32 %v272, %v550
      %v829 = vadd.f32 %v273, %v551
      %v830 = vadd.f32 %v274, %v552
      %v831 = vadd.f32 %v275, %v553
      %v832 = vadd.f32 %v276, %v554
      %v833 = vadd.f32 %v277, %v555
      %v834 = vadd.f32 %v278, %v556
      %v835 = vadd.f32 %v279, %v557
      %v836 = vadd.f32 %v280, %v558
      %v837 = vadd.f32 %v281, %v559
      %v838 = vadd.f32 %v282, %v560
      %v839 = vadd.f32 %v283, %v561
      %v840 = vadd.f32 %v284, %v562
      %v841 = vadd.f32 %v285, %v563
      %v842 = vadd.f32 %v286, %v564
      %v843 = vadd.f32 %v287, %v565
      %v844 = vadd.f32 %v288, %v566
      %v845 = vadd.f32 %v289, %v567
      %v846 = vadd.f32 %v290, %v568
      %v847 = vadd.f32 %v291, %v569
      %v848 = vadd.f32 %v292, %v570
      %v849 = vadd.f32 %v293, %v571
      %v850 = vadd.f32 %v294, %v572
      %v851 = vadd.f32 %v295, %v573
      %v852 = vadd.f32 %v296, %v574
      %v853 = vadd.f32 %v297, %v575
      %v854 = vadd.f32 %v298, %v576
      %v855 = vadd.f32 %v299, %v577
      %v856 = vadd.f32 %v300, %v578
      %v857 = vadd.f32 %v301, %v579
      %v858 = vadd.f32 %v302, %v580
      %v859 = vadd.f32 %v303, %v581
      %v860 = vadd.f32 %v304, %v582
      %v861 = vadd.f32 %v305, %v583
      %v862 = vadd.f32 %v306, %v584
      %v863 = vadd.f32 %v307, %v585
      %v864 = vadd.f32 %v308, %v586
      %v865 = vadd.f32 %v309, %v587
      %v866 = vadd.f32 %v310, %v588
      %v867 = vadd.f32 %v311, %v589
      %v868 = vadd.f32 %v312, %v590
      %v869 = vadd.f32 %v313, %v591
      %v870 = vadd.f32 %v314, %v592
      %v871 = vadd.f32 %v315, %v593
      %v872 = vadd.f32 %v316, %v594
      %v873 = vadd.f32 %v317, %v595
      %v874 = vadd.f32 %v318, %v596
      %v875 = vadd.f32 %v319, %v597
      %v876 = vadd.f32 %v320, %v598
      %v877 = vadd.f32 %v321, %v599
      %v878 = vadd.f32 %v322, %v600
      %v879 = vadd.f32 %v323, %v601
      %v880 = vadd.f32 %v324, %v602
      %v881 = vadd.f32 %v325, %v603
      %v882 = vadd.f32 %v326, %v604
      %v883 = vadd.f32 %v327, %v605
      %v884 = vadd.f32 %v328, %v606
      %v885 = vadd.f32 %v329, %v607
      %v886 = vadd.f32 %v330, %v608
      %v887 = vadd.f32 %v331, %v609
      %v888 = vadd.f32 %v332, %v610
      %v889 = vadd.f32 %v333, %v611
      %v890 = vadd.f32 %v334, %v612
      %v891 = vadd.f32 %v335, %v613
      %v892 = vadd.f32 %v336, %v614
      %v893 = vadd.f32 %v337, %v615
      %v894 = vadd.f32 %v338, %v616
      %v895 = vadd.f32 %v339, %v617
      %v896 = vadd.f32 %v340, %v618
      %v897 = vadd.f32 %v341, %v619
      %v898 = vadd.f32 %v342, %v620
      %v899 = vadd.f32 %v343, %v621
      %v900 = vadd.f32 %v344, %v622
      %v901 = vadd.f32 %v345, %v623
      %v902 = vadd.f32 %v346, %v624
      %v903 = vadd.f32 %v347, %v625
      %v904 = vadd.f32 %v348, %v626
      %v905 = vadd.f32 %v349, %v627
      %v906 = vadd.f32 %v350, %v628
      %v907 = vadd.f32 %v351, %v629
      %v908 = vadd.f32 %v352, %v630
      %v909 = vadd.f32 %v353, %v631
      %v910 = vadd.f32 %v354, %v632
      %v911 = vadd.f32 %v355, %v633
      %v912 = vadd.f32 %v356, %v634
      %v913 = vadd.f32 %v357, %v635
      %v914 = vadd.f32 %v358, %v636
      %v915 = vadd.f32 %v359, %v637
      %v916 = vadd.f32 %v360, %v638
      %v917 = vadd.f32 %v361, %v639
      %v918 = vadd.f32 %v362, %v640
      %v919 = vadd.f32 %v363, %v641
      %v920 = vadd.f32 %v364, %v642
      %v921 = vadd.f32 %v365, %v643
      %v922 = vadd.f32 %v366, %v644
      %v923 = vadd.f32 %v367, %v645
      %v924 = vadd.f32 %v368, %v646
      %v925 = vadd.f32 %v369, %v647
      %v926 = vadd.f32 %v370, %v648
      %v927 = vadd.f32 %v371, %v649
      %v928 = vadd.f32 %v372, %v650
      %v929 = vadd.f32 %v373, %v651
      %v930 = vadd.f32 %v374, %v652
      %v931 = vadd.f32 %v375, %v653
      %v932 = vadd.f32 %v376, %v654
      %v933 = vadd.f32 %v377, %v655
      %v934 = vadd.f32 %v378, %v656
      %v935 = vadd.f32 %v379, %v657
      %v936 = vadd.f32 %v380, %v658
      %v937 = vadd.f32 %v381, %v659
      %v938 = vadd.f32 %v382, %v660
      %v939 = vadd.f32 %v383, %v661
      %v940 = vadd.f32 %v384, %v662
      %v941 = vadd.f32 %v385, %v663
      %v942 = vadd.f32 %v386, %v664
      %v943 = vadd.f32 %v387, %v665
      %v944 = vadd.f32 %v388, %v666
      %v945 = vadd.f32 %v389, %v667
      %v946 = vadd.f32 %v390, %v668
      %v947 = vadd.f32 %v391, %v669
      %v948 = vadd.f32 %v392, %v670
      %v949 = vadd.f32 %v393, %v671
      %v950 = vadd.f32 %v394, %v672
      %v951 = vadd.f32 %v395, %v673
      %v952 = vadd.f32 %v396, %v674
      %v953 = vadd.f32 %v397, %v675
      %v954 = vadd.f32 %v398, %v676
      %v955 = vadd.f32 %v399, %v677
      %v956 = vadd.f32 %v400, %v678
      %v957 = vadd.f32 %v401, %v679
      %v958 = vadd.f32 %v402, %v680
      %v959 = vadd.f32 %v403, %v681
      %v960 = vadd.f32 %v404, %v682
      %v961 = vadd.f32 %v405, %v683
      %v962 = vadd.f32 %v406, %v684
      %v963 = vadd.f32 %v407, %v685
      %v964 = vadd.f32 %v408, %v686
      %v965 = vadd.f32 %v409, %v687
      %v966 = vadd.f32 %v410, %v688
      %v967 = vadd.f32 %v411, %v689
      %v968 = vadd.f32 %v412, %v690
      %v969 = vadd.f32 %v413, %v691
      %v970 = vadd.f32 %v414, %v692
      %v971 = vadd.f32 %v415, %v693
      %v972 = vadd.f32 %v416, %v694
      %v973 = vadd.f32 %v417, %v695
      %v974 = vadd.f32 %v418, %v696
      %v975 = vadd.f32 %v419, %v697
      %v976 = vadd.f32 %v420, %v698
      %v977 = vadd.f32 %v421, %v699
      %v978 = vadd.f32 %v422, %v700
      %v979 = vadd.f32 %v423, %v701
      %v980 = vadd.f32 %v424, %v702
      %v981 = vadd.f32 %v425, %v703
      %v982 = vadd.f32 %v426, %v704
      %v983 = vadd.f32 %v427, %v705
      %v984 = vadd.f32 %v428, %v706
      %v985 = vadd.f32 %v429, %v707
      %v986 = vadd.f32 %v430, %v708
      %v987 = vadd.f32 %v431, %v709
      %v988 = vadd.f32 %v432, %v710
      %v989 = vadd.f32 %v433, %v711
      %v990 = vadd.f32 %v434, %v712
      %v991 = vadd.f32 %v435, %v713
      %v992 = vadd.f32 %v436, %v714
      %v993 = vadd.f32 %v437, %v715
      %v994 = vadd.f32 %v438, %v716
      %v995 = vadd.f32 %v439, %v717
      %v996 = vadd.f32 %v440, %v718
      %v997 = vadd.f32 %v441, %v719
      %v998 = vadd.f32 %v442, %v720
      %v999 = vadd.f32 %v443, %v721
      %v1000 = vadd.f32 %v444, %v722
      %v1001 = vadd.f32 %v445, %v723
      %v1002 = vadd.f32 %v446, %v724
      %v1003 = vadd.f32 %v447, %v725
      %v1004 = vadd.f32 %v448, %v726
      %v1005 = vadd.f32 %v449, %v727
      %v1006 = vadd.f32 %v450, %v728
      %v1007 = vadd.f32 %v451, %v729
      %v1008 = vadd.f32 %v452, %v730
      %v1009 = vadd.f32 %v453, %v731
      %v1010 = vadd.f32 %v454, %v732
      %1011 = vst [vmem:[%s175] sm:$0xff] %v733
      %1012 = vst [vmem:[%s175 + $0x8] sm:$0xff] %v734
      %1013 = vst [vmem:[%s175 + $0x10] sm:$0xff] %v735
      %1014 = vst [vmem:[%s175 + $0x18] sm:$0xff] %v736
      %1015 = vst [vmem:[%s175 + $0x20] sm:$0xff] %v737
      %1016 = vst [vmem:[%s175 + $0x28] sm:$0xff] %v738
      %1017 = vst [vmem:[%s175 + $0x30] sm:$0xff] %v739
      %1018 = vst [vmem:[%s175 + $0x38] sm:$0xff] %v740
      %1019 = vst [vmem:[%s175 + $0x40] sm:$0xff] %v741
      %1020 = vst [vmem:[%s175 + $0x48] sm:$0xff] %v742
      %1021 = vst [vmem:[%s175 + $0x50] sm:$0xff] %v743
      %1022 = vst [vmem:[%s175 + $0x58] sm:$0xff] %v744
      %1023 = vst [vmem:[%s175 + $0x60] sm:$0xff] %v745
      %1024 = vst [vmem:[%s175 + $0x68] sm:$0xff] %v746
      %1025 = vst [vmem:[%s175 + $0x70] sm:$0xff] %v747
      %1026 = vst [vmem:[%s175 + $0x78] sm:$0xff] %v748
      %1027 = vst [vmem:[%s175 + $0x80] sm:$0xff] %v749
      %1028 = vst [vmem:[%s175 + $0x88] sm:$0xff] %v750
      %1029 = vst [vmem:[%s175 + $0x90] sm:$0xff] %v751
      %1030 = vst [vmem:[%s175 + $0x98] sm:$0xff] %v752
      %1031 = vst [vmem:[%s175 + $0xa0] sm:$0xff] %v753
      %1032 = vst [vmem:[%s175 + $0xa8] sm:$0xff] %v754
      %1033 = vst [vmem:[%s175 + $0xb0] sm:$0xff] %v755
      %1034 = vst [vmem:[%s175 + $0xb8] sm:$0xff] %v756
      %1035 = vst [vmem:[%s175 + $0xc0] sm:$0xff] %v757
      %1036 = vst [vmem:[%s175 + $0xc8] sm:$0xff] %v758
      %1037 = vst [vmem:[%s175 + $0xd0] sm:$0xff] %v759
      %1038 = vst [vmem:[%s175 + $0xd8] sm:$0xff] %v760
      %1039 = vst [vmem:[%s175 + $0xe0] sm:$0xff] %v761
      %1040 = vst [vmem:[%s175 + $0xe8] sm:$0xff] %v762
      %1041 = vst [vmem:[%s175 + $0xf0] sm:$0xff] %v763
      %1042 = vst [vmem:[%s175 + $0xf8] sm:$0xff] %v764
      %1043 = vst [vmem:[%s175 + $0x100] sm:$0xff] %v765
      %1044 = vst [vmem:[%s175 + $0x108] sm:$0xff] %v766
      %1045 = vst [vmem:[%s175 + $0x110] sm:$0xff] %v767
      %1046 = vst [vmem:[%s175 + $0x118] sm:$0xff] %v768
      %1047 = vst [vmem:[%s175 + $0x120] sm:$0xff] %v769
      %1048 = vst [vmem:[%s175 + $0x128] sm:$0xff] %v770
      %1049 = vst [vmem:[%s175 + $0x130] sm:$0xff] %v771
      %1050 = vst [vmem:[%s175 + $0x138] sm:$0xff] %v772
      %1051 = vst [vmem:[%s175 + $0x140] sm:$0xff] %v773
      %1052 = vst [vmem:[%s175 + $0x148] sm:$0xff] %v774
      %1053 = vst [vmem:[%s175 + $0x150] sm:$0xff] %v775
      %1054 = vst [vmem:[%s175 + $0x158] sm:$0xff] %v776
      %1055 = vst [vmem:[%s175 + $0x160] sm:$0xff] %v777
      %1056 = vst [vmem:[%s175 + $0x168] sm:$0xff] %v778
      %1057 = vst [vmem:[%s175 + $0x170] sm:$0xff] %v779
      %1058 = vst [vmem:[%s175 + $0x178] sm:$0xff] %v780
      %1059 = vst [vmem:[%s175 + $0x180] sm:$0xff] %v781
      %1060 = vst [vmem:[%s175 + $0x188] sm:$0xff] %v782
      %1061 = vst [vmem:[%s175 + $0x190] sm:$0xff] %v783
      %1062 = vst [vmem:[%s175 + $0x198] sm:$0xff] %v784
      %1063 = vst [vmem:[%s175 + $0x1a0] sm:$0xff] %v785
      %1064 = vst [vmem:[%s175 + $0x1a8] sm:$0xff] %v786
      %1065 = vst [vmem:[%s175 + $0x1b0] sm:$0xff] %v787
      %1066 = vst [vmem:[%s175 + $0x1b8] sm:$0xff] %v788
      %1067 = vst [vmem:[%s175 + $0x1c0] sm:$0xff] %v789
      %1068 = vst [vmem:[%s175 + $0x1c8] sm:$0xff] %v790
      %1069 = vst [vmem:[%s175 + $0x1d0] sm:$0xff] %v791
      %1070 = vst [vmem:[%s175 + $0x1d8] sm:$0xff] %v792
      %1071 = vst [vmem:[%s175 + $0x1e0] sm:$0xff] %v793
      %1072 = vst [vmem:[%s175 + $0x1e8] sm:$0xff] %v794
      %1073 = vst [vmem:[%s175 + $0x1f0] sm:$0xff] %v795
      %1074 = vst [vmem:[%s175 + $0x1f8] sm:$0xff] %v796
      %1075 = vst [vmem:[%s175 + $0x200] sm:$0xff] %v797
      %1076 = vst [vmem:[%s175 + $0x208] sm:$0xff] %v798
      %1077 = vst [vmem:[%s175 + $0x210] sm:$0xff] %v799
      %1078 = vst [vmem:[%s175 + $0x218] sm:$0xff] %v800
      %1079 = vst [vmem:[%s175 + $0x220] sm:$0xff] %v801
      %1080 = vst [vmem:[%s175 + $0x228] sm:$0xff] %v802
      %1081 = vst [vmem:[%s175 + $0x230] sm:$0xff] %v803
      %1082 = vst [vmem:[%s175 + $0x238] sm:$0xff] %v804
      %1083 = vst [vmem:[%s175 + $0x240] sm:$0xff] %v805
      %1084 = vst [vmem:[%s175 + $0x248] sm:$0xff] %v806
      %1085 = vst [vmem:[%s175 + $0x250] sm:$0xff] %v807
      %1086 = vst [vmem:[%s175 + $0x258] sm:$0xff] %v808
      %1087 = vst [vmem:[%s175 + $0x260] sm:$0xff] %v809
      %1088 = vst [vmem:[%s175 + $0x268] sm:$0xff] %v810
      %1089 = vst [vmem:[%s175 + $0x270] sm:$0xff] %v811
      %1090 = vst [vmem:[%s175 + $0x278] sm:$0xff] %v812
      %1091 = vst [vmem:[%s175 + $0x280] sm:$0xff] %v813
      %1092 = vst [vmem:[%s175 + $0x288] sm:$0xff] %v814
      %1093 = vst [vmem:[%s175 + $0x290] sm:$0xff] %v815
      %1094 = vst [vmem:[%s175 + $0x298] sm:$0xff] %v816
      %1095 = vst [vmem:[%s175 + $0x2a0] sm:$0xff] %v817
      %1096 = vst [vmem:[%s175 + $0x2a8] sm:$0xff] %v818
      %1097 = vst [vmem:[%s175 + $0x2b0] sm:$0xff] %v819
      %1098 = vst [vmem:[%s175 + $0x2b8] sm:$0xff] %v820
      %1099 = vst [vmem:[%s175 + $0x2c0] sm:$0xff] %v821
      %1100 = vst [vmem:[%s175 + $0x2c8] sm:$0xff] %v822
      %1101 = vst [vmem:[%s175 + $0x2d0] sm:$0xff] %v823
      %1102 = vst [vmem:[%s175 + $0x2d8] sm:$0xff] %v824
      %1103 = vst [vmem:[%s175 + $0x2e0] sm:$0xff] %v825
      %1104 = vst [vmem:[%s175 + $0x2e8] sm:$0xff] %v826
      %1105 = vst [vmem:[%s175 + $0x2f0] sm:$0xff] %v827
      %1106 = vst [vmem:[%s175 + $0x2f8] sm:$0xff] %v828
      %1107 = vst [vmem:[%s175 + $0x300] sm:$0xff] %v829
      %1108 = vst [vmem:[%s175 + $0x308] sm:$0xff] %v830
      %1109 = vst [vmem:[%s175 + $0x310] sm:$0xff] %v831
      %1110 = vst [vmem:[%s175 + $0x318] sm:$0xff] %v832
      %1111 = vst [vmem:[%s175 + $0x320] sm:$0xff] %v833
      %1112 = vst [vmem:[%s175 + $0x328] sm:$0xff] %v834
      %1113 = vst [vmem:[%s175 + $0x330] sm:$0xff] %v835
      %1114 = vst [vmem:[%s175 + $0x338] sm:$0xff] %v836
      %1115 = vst [vmem:[%s175 + $0x340] sm:$0xff] %v837
      %1116 = vst [vmem:[%s175 + $0x348] sm:$0xff] %v838
      %1117 = vst [vmem:[%s175 + $0x350] sm:$0xff] %v839
      %1118 = vst [vmem:[%s175 + $0x358] sm:$0xff] %v840
      %1119 = vst [vmem:[%s175 + $0x360] sm:$0xff] %v841
      %1120 = vst [vmem:[%s175 + $0x368] sm:$0xff] %v842
      %1121 = vst [vmem:[%s175 + $0x370] sm:$0xff] %v843
      %1122 = vst [vmem:[%s175 + $0x378] sm:$0xff] %v844
      %1123 = vst [vmem:[%s175 + $0x380] sm:$0xff] %v845
      %1124 = vst [vmem:[%s175 + $0x388] sm:$0xff] %v846
      %1125 = vst [vmem:[%s175 + $0x390] sm:$0xff] %v847
      %1126 = vst [vmem:[%s175 + $0x398] sm:$0xff] %v848
      %1127 = vst [vmem:[%s175 + $0x3a0] sm:$0xff] %v849
      %1128 = vst [vmem:[%s175 + $0x3a8] sm:$0xff] %v850
      %1129 = vst [vmem:[%s175 + $0x3b0] sm:$0xff] %v851
      %1130 = vst [vmem:[%s175 + $0x3b8] sm:$0xff] %v852
      %1131 = vst [vmem:[%s175 + $0x3c0] sm:$0xff] %v853
      %1132 = vst [vmem:[%s175 + $0x3c8] sm:$0xff] %v854
      %1133 = vst [vmem:[%s175 + $0x3d0] sm:$0xff] %v855
      %1134 = vst [vmem:[%s175 + $0x3d8] sm:$0xff] %v856
      %1135 = vst [vmem:[%s175 + $0x3e0] sm:$0xff] %v857
      %1136 = vst [vmem:[%s175 + $0x3e8] sm:$0xff] %v858
      %1137 = vst [vmem:[%s175 + $0x3f0] sm:$0xff] %v859
      %1138 = vst [vmem:[%s175 + $0x3f8] sm:$0xff] %v860
      %1139 = vst [vmem:[%s175 + $0x400] sm:$0xff] %v861
      %1140 = vst [vmem:[%s175 + $0x408] sm:$0xff] %v862
      %1141 = vst [vmem:[%s175 + $0x410] sm:$0xff] %v863
      %1142 = vst [vmem:[%s175 + $0x418] sm:$0xff] %v864
      %1143 = vst [vmem:[%s175 + $0x420] sm:$0xff] %v865
      %1144 = vst [vmem:[%s175 + $0x428] sm:$0xff] %v866
      %1145 = vst [vmem:[%s175 + $0x430] sm:$0xff] %v867
      %1146 = vst [vmem:[%s175 + $0x438] sm:$0xff] %v868
      %1147 = vst [vmem:[%s175 + $0x440] sm:$0xff] %v869
      %1148 = vst [vmem:[%s175 + $0x448] sm:$0xff] %v870
      %vm1149 = vcmask 1006592
      %1150 = vst.msk [vmem:[%s175 + $0x450] sm:$0xff] %vm1149, %v871
      %1151 = vst [vmem:[%s175 + $0x458] sm:$0xff] %v872
      %1152 = vst [vmem:[%s175 + $0x460] sm:$0xff] %v873
      %1153 = vst [vmem:[%s175 + $0x468] sm:$0xff] %v874
      %1154 = vst [vmem:[%s175 + $0x470] sm:$0xff] %v875
      %1155 = vst [vmem:[%s175 + $0x478] sm:$0xff] %v876
      %1156 = vst [vmem:[%s175 + $0x480] sm:$0xff] %v877
      %1157 = vst [vmem:[%s175 + $0x488] sm:$0xff] %v878
      %1158 = vst [vmem:[%s175 + $0x490] sm:$0xff] %v879
      %1159 = vst [vmem:[%s175 + $0x498] sm:$0xff] %v880
      %1160 = vst [vmem:[%s175 + $0x4a0] sm:$0xff] %v881
      %1161 = vst [vmem:[%s175 + $0x4a8] sm:$0xff] %v882
      %1162 = vst [vmem:[%s175 + $0x4b0] sm:$0xff] %v883
      %1163 = vst [vmem:[%s175 + $0x4b8] sm:$0xff] %v884
      %1164 = vst [vmem:[%s175 + $0x4c0] sm:$0xff] %v885
      %1165 = vst [vmem:[%s175 + $0x4c8] sm:$0xff] %v886
      %1166 = vst [vmem:[%s175 + $0x4d0] sm:$0xff] %v887
      %1167 = vst [vmem:[%s175 + $0x4d8] sm:$0xff] %v888
      %1168 = vst [vmem:[%s175 + $0x4e0] sm:$0xff] %v889
      %1169 = vst [vmem:[%s175 + $0x4e8] sm:$0xff] %v890
      %1170 = vst [vmem:[%s175 + $0x4f0] sm:$0xff] %v891
      %1171 = vst [vmem:[%s175 + $0x4f8] sm:$0xff] %v892
      %1172 = vst [vmem:[%s175 + $0x500] sm:$0xff] %v893
      %1173 = vst [vmem:[%s175 + $0x508] sm:$0xff] %v894
      %1174 = vst [vmem:[%s175 + $0x510] sm:$0xff] %v895
      %1175 = vst [vmem:[%s175 + $0x518] sm:$0xff] %v896
      %1176 = vst [vmem:[%s175 + $0x520] sm:$0xff] %v897
      %1177 = vst [vmem:[%s175 + $0x528] sm:$0xff] %v898
      %1178 = vst [vmem:[%s175 + $0x530] sm:$0xff] %v899
      %1179 = vst [vmem:[%s175 + $0x538] sm:$0xff] %v900
      %1180 = vst [vmem:[%s175 + $0x540] sm:$0xff] %v901
      %1181 = vst [vmem:[%s175 + $0x548] sm:$0xff] %v902
      %1182 = vst [vmem:[%s175 + $0x550] sm:$0xff] %v903
      %1183 = vst [vmem:[%s175 + $0x558] sm:$0xff] %v904
      %1184 = vst [vmem:[%s175 + $0x560] sm:$0xff] %v905
      %1185 = vst [vmem:[%s175 + $0x568] sm:$0xff] %v906
      %1186 = vst [vmem:[%s175 + $0x570] sm:$0xff] %v907
      %1187 = vst [vmem:[%s175 + $0x578] sm:$0xff] %v908
      %1188 = vst [vmem:[%s175 + $0x580] sm:$0xff] %v909
      %1189 = vst [vmem:[%s175 + $0x588] sm:$0xff] %v910
      %1190 = vst [vmem:[%s175 + $0x590] sm:$0xff] %v911
      %1191 = vst [vmem:[%s175 + $0x598] sm:$0xff] %v912
      %1192 = vst [vmem:[%s175 + $0x5a0] sm:$0xff] %v913
      %1193 = vst [vmem:[%s175 + $0x5a8] sm:$0xff] %v914
      %1194 = vst [vmem:[%s175 + $0x5b0] sm:$0xff] %v915
      %1195 = vst [vmem:[%s175 + $0x5b8] sm:$0xff] %v916
      %1196 = vst [vmem:[%s175 + $0x5c0] sm:$0xff] %v917
      %1197 = vst [vmem:[%s175 + $0x5c8] sm:$0xff] %v918
      %1198 = vst [vmem:[%s175 + $0x5d0] sm:$0xff] %v919
      %1199 = vst [vmem:[%s175 + $0x5d8] sm:$0xff] %v920
      %1200 = vst [vmem:[%s175 + $0x5e0] sm:$0xff] %v921
      %1201 = vst [vmem:[%s175 + $0x5e8] sm:$0xff] %v922
      %1202 = vst [vmem:[%s175 + $0x5f0] sm:$0xff] %v923
      %1203 = vst [vmem:[%s175 + $0x5f8] sm:$0xff] %v924
      %1204 = vst [vmem:[%s175 + $0x600] sm:$0xff] %v925
      %1205 = vst [vmem:[%s175 + $0x608] sm:$0xff] %v926
      %1206 = vst [vmem:[%s175 + $0x610] sm:$0xff] %v927
      %1207 = vst [vmem:[%s175 + $0x618] sm:$0xff] %v928
      %1208 = vst [vmem:[%s175 + $0x620] sm:$0xff] %v929
      %1209 = vst [vmem:[%s175 + $0x628] sm:$0xff] %v930
      %1210 = vst [vmem:[%s175 + $0x630] sm:$0xff] %v931
      %1211 = vst [vmem:[%s175 + $0x638] sm:$0xff] %v932
      %1212 = vst [vmem:[%s175 + $0x640] sm:$0xff] %v933
      %1213 = vst [vmem:[%s175 + $0x648] sm:$0xff] %v934
      %1214 = vst [vmem:[%s175 + $0x650] sm:$0xff] %v935
      %1215 = vst [vmem:[%s175 + $0x658] sm:$0xff] %v936
      %1216 = vst [vmem:[%s175 + $0x660] sm:$0xff] %v937
      %1217 = vst [vmem:[%s175 + $0x668] sm:$0xff] %v938
      %1218 = vst [vmem:[%s175 + $0x670] sm:$0xff] %v939
      %1219 = vst [vmem:[%s175 + $0x678] sm:$0xff] %v940
      %1220 = vst [vmem:[%s175 + $0x680] sm:$0xff] %v941
      %1221 = vst [vmem:[%s175 + $0x688] sm:$0xff] %v942
      %1222 = vst [vmem:[%s175 + $0x690] sm:$0xff] %v943
      %1223 = vst [vmem:[%s175 + $0x698] sm:$0xff] %v944
      %1224 = vst [vmem:[%s175 + $0x6a0] sm:$0xff] %v945
      %1225 = vst [vmem:[%s175 + $0x6a8] sm:$0xff] %v946
      %1226 = vst [vmem:[%s175 + $0x6b0] sm:$0xff] %v947
      %1227 = vst [vmem:[%s175 + $0x6b8] sm:$0xff] %v948
      %1228 = vst [vmem:[%s175 + $0x6c0] sm:$0xff] %v949
      %1229 = vst [vmem:[%s175 + $0x6c8] sm:$0xff] %v950
      %1230 = vst [vmem:[%s175 + $0x6d0] sm:$0xff] %v951
      %1231 = vst [vmem:[%s175 + $0x6d8] sm:$0xff] %v952
      %1232 = vst [vmem:[%s175 + $0x6e0] sm:$0xff] %v953
      %1233 = vst [vmem:[%s175 + $0x6e8] sm:$0xff] %v954
      %1234 = vst [vmem:[%s175 + $0x6f0] sm:$0xff] %v955
      %1235 = vst [vmem:[%s175 + $0x6f8] sm:$0xff] %v956
      %1236 = vst [vmem:[%s175 + $0x700] sm:$0xff] %v957
      %1237 = vst [vmem:[%s175 + $0x708] sm:$0xff] %v958
      %1238 = vst [vmem:[%s175 + $0x710] sm:$0xff] %v959
      %1239 = vst [vmem:[%s175 + $0x718] sm:$0xff] %v960
      %1240 = vst [vmem:[%s175 + $0x720] sm:$0xff] %v961
      %1241 = vst [vmem:[%s175 + $0x728] sm:$0xff] %v962
      %1242 = vst [vmem:[%s175 + $0x730] sm:$0xff] %v963
      %1243 = vst [vmem:[%s175 + $0x738] sm:$0xff] %v964
      %1244 = vst [vmem:[%s175 + $0x740] sm:$0xff] %v965
      %1245 = vst [vmem:[%s175 + $0x748] sm:$0xff] %v966
      %1246 = vst [vmem:[%s175 + $0x750] sm:$0xff] %v967
      %1247 = vst [vmem:[%s175 + $0x758] sm:$0xff] %v968
      %1248 = vst [vmem:[%s175 + $0x760] sm:$0xff] %v969
      %1249 = vst [vmem:[%s175 + $0x768] sm:$0xff] %v970
      %1250 = vst [vmem:[%s175 + $0x770] sm:$0xff] %v971
      %1251 = vst [vmem:[%s175 + $0x778] sm:$0xff] %v972
      %1252 = vst [vmem:[%s175 + $0x780] sm:$0xff] %v973
      %1253 = vst [vmem:[%s175 + $0x788] sm:$0xff] %v974
      %1254 = vst [vmem:[%s175 + $0x790] sm:$0xff] %v975
      %1255 = vst [vmem:[%s175 + $0x798] sm:$0xff] %v976
      %1256 = vst [vmem:[%s175 + $0x7a0] sm:$0xff] %v977
      %1257 = vst [vmem:[%s175 + $0x7a8] sm:$0xff] %v978
      %1258 = vst [vmem:[%s175 + $0x7b0] sm:$0xff] %v979
      %1259 = vst [vmem:[%s175 + $0x7b8] sm:$0xff] %v980
      %1260 = vst [vmem:[%s175 + $0x7c0] sm:$0xff] %v981
      %1261 = vst [vmem:[%s175 + $0x7c8] sm:$0xff] %v982
      %1262 = vst [vmem:[%s175 + $0x7d0] sm:$0xff] %v983
      %1263 = vst [vmem:[%s175 + $0x7d8] sm:$0xff] %v984
      %1264 = vst [vmem:[%s175 + $0x7e0] sm:$0xff] %v985
      %1265 = vst [vmem:[%s175 + $0x7e8] sm:$0xff] %v986
      %1266 = vst [vmem:[%s175 + $0x7f0] sm:$0xff] %v987
      %1267 = vst [vmem:[%s175 + $0x7f8] sm:$0xff] %v988
      %1268 = vst [vmem:[%s175 + $0x800] sm:$0xff] %v989
      %1269 = vst [vmem:[%s175 + $0x808] sm:$0xff] %v990
      %1270 = vst [vmem:[%s175 + $0x810] sm:$0xff] %v991
      %1271 = vst [vmem:[%s175 + $0x818] sm:$0xff] %v992
      %1272 = vst [vmem:[%s175 + $0x820] sm:$0xff] %v993
      %1273 = vst [vmem:[%s175 + $0x828] sm:$0xff] %v994
      %1274 = vst [vmem:[%s175 + $0x830] sm:$0xff] %v995
      %1275 = vst [vmem:[%s175 + $0x838] sm:$0xff] %v996
      %1276 = vst [vmem:[%s175 + $0x840] sm:$0xff] %v997
      %1277 = vst [vmem:[%s175 + $0x848] sm:$0xff] %v998
      %1278 = vst [vmem:[%s175 + $0x850] sm:$0xff] %v999
      %1279 = vst [vmem:[%s175 + $0x858] sm:$0xff] %v1000
      %1280 = vst [vmem:[%s175 + $0x860] sm:$0xff] %v1001
      %1281 = vst [vmem:[%s175 + $0x868] sm:$0xff] %v1002
      %1282 = vst [vmem:[%s175 + $0x870] sm:$0xff] %v1003
      %1283 = vst [vmem:[%s175 + $0x878] sm:$0xff] %v1004
      %1284 = vst [vmem:[%s175 + $0x880] sm:$0xff] %v1005
      %1285 = vst [vmem:[%s175 + $0x888] sm:$0xff] %v1006
      %1286 = vst [vmem:[%s175 + $0x890] sm:$0xff] %v1007
      %1287 = vst [vmem:[%s175 + $0x898] sm:$0xff] %v1008
      %1288 = vst [vmem:[%s175 + $0x8a0] sm:$0xff] %v1009
      %1289 = vst.msk [vmem:[%s175 + $0x8a8] sm:$0xff] %vm1149, %v1010
      %s1290 = smul.u32 2, %s13
      %p1291 = scmp.lt.s32.totalorder %s1290, 3
      %s1292 = scalar_select %p1291, %s1290, 3
      %s1293 = smul.addr %s1292, 139
      %s1294 = smul.addr %s1293, 8
      %s1295 = scalar_lea.vmem %s2, %s1294
      // Predicated region
      $region29: #{pallas_add.1} parent=27 // pred_check
        %p1296 = pneg %p83
      $region30: #{pallas_add.1} parent=27 // pred_check_branch
        %1298 = sbr.rel (%p1296) target = $region32
      $region31: #{pallas_add.1} parent=27 // pred_region
        %s1299 = smul.u32 2, %s13
      $region32: #{pallas_add.1} parent=27 // pred_fallthru
        _
    $region28: #{pallas_add.1} parent=5 // pred_fallthru
      _
    %p1300 = scmp.le.s32.totalorder 2, %s8
    // Predicated region
    $region33: #{pallas_add.1} parent=5 // pred_check
      %p1301 = pneg %p1300
    $region34: #{pallas_add.1} parent=5 // pred_check_branch
      %1303 = sbr.rel (%p1301) target = $region36
    $region35: #{pallas_add.1} parent=5 // pred_region
      %s1304 = ssub.s32 %s8, 2
      // Predicated region
      $region37: #{pallas_add.1} parent=35 // pred_check
        %p1305 = pneg %p89
      $region38: #{pallas_add.1} parent=35 // pred_check_branch
        %1307 = sbr.rel (%p1305) target = $region40
      $region39: #{pallas_add.1} parent=35 // pred_region
        %s1308 = smul.u32 2, %s14
        %p1309 = scmp.lt.s32.totalorder %s1308, 3
        %s1310 = scalar_select %p1309, %s1308, 3
        %s1311 = smul.addr %s1310, 139
        %s1312 = smul.addr %s1311, 8
        %s1313 = scalar_lea.vmem %s2, %s1312
      $region40: #{pallas_add.1} parent=35 // pred_fallthru
        _
    $region36: #{pallas_add.1} parent=5 // pred_fallthru
      _
  $region6: #{pallas_add.1} parent=0 // loop_footer
    %s12 = sadd.s32 1, %s8
  $region7: #{pallas_add.1} parent=0 // loop_footer_branch
    %7 = sbr.rel target = $region3
  $region8: #{pallas_add.1} parent=0 // loop_exit
    _

</llo_original>
